<compile_context>
chip_gen: v7x
topology: tpu7x:2x2x1
jax: 0.10.0
libtpu: 0.0.40
codegen_flags: <defaults>
</compile_context>

<pallas_src>
import functools

import jax
import jax.numpy as jnp
from jax.experimental import pallas as pl
from jax.experimental.pallas import tpu as pltpu


def _snn_lstm_kernel(xg_ref, whT_ref, out_ref, c_out_ref,
                     h_s, c_s, vg_s, vct_s,
                     *, time_block, hidden_size,
                     inv_tau, decay, reset_inc, v_th, v_reset):
    tb = pl.program_id(1)

    @pl.when(tb == 0)
    def _init():
        # Fresh state at the start of each batch tile's time sweep.
        h_s[...] = jnp.zeros_like(h_s)
        c_s[...] = jnp.zeros_like(c_s)
        vg_s[...] = jnp.full_like(vg_s, v_reset)
        vct_s[...] = jnp.full_like(vct_s, v_reset)

    whT = whT_ref[...]          # (H, 4H), resident across the whole grid
    H = hidden_size

    def lif(v, x):
        # v + (x - (v - v_reset))/tau  ==  v*(1 - 1/tau) + x/tau + v_reset/tau
        v = v * decay + x * inv_tau + reset_inc
        fired = v >= v_th
        spike = fired.astype(jnp.float32)
        v = jnp.where(fired, v_reset, v)          # hard reset
        return spike, v

    def step(t, carry):
        h_prev = h_s[...]                         # already in the matmul dtype
        c_prev = c_s[...]
        # xg already holds x_t @ W_in^T + b_in + b_h (hoisted to the wrapper);
        # the serial critical path is just the recurrent matmul (f32 accum).
        gates = (xg_ref[t].astype(jnp.float32)
                 + jnp.dot(h_prev, whT, preferred_element_type=jnp.float32))

        # One fused, lane-dense LIF update over all four gate neurons.
        s_g, vg = lif(vg_s[...], gates)
        vg_s[...] = vg
        # torch.split order: i_gate, o_gate, f_gate, c_state
        s_i = s_g[:, 0 * H:1 * H]
        s_o = s_g[:, 1 * H:2 * H]
        s_f = s_g[:, 2 * H:3 * H]
        s_cs = s_g[:, 3 * H:4 * H]

        c_new = s_f * c_prev + s_i * s_cs
        s_ct, vct = lif(vct_s[...], c_new)
        vct_s[...] = vct
        h_new = s_o * s_ct                        # values are exactly 0 or 1

        h_s[...] = h_new.astype(h_s.dtype)        # exact: 0/1 in any dtype
        c_s[...] = c_new
        out_ref[t] = h_new.astype(out_ref.dtype)  # exact: 0/1 in any dtype
        return carry

    # Serial recurrence: partial unroll keeps LLO scheduling visibility without
    # exploding instruction memory / vreg live ranges for large time blocks.
    jax.lax.fori_loop(0, time_block, step, 0, unroll=min(8, time_block))

    # Only the last time block's cell state matters; skip redundant stores.
    @pl.when(tb == pl.num_programs(1) - 1)
    def _write_c():
        c_out_ref[...] = c_s[...]


def _pick_time_block(T, Nb, H, H4, xg_isz, out_isz, w_isz, budget_bytes):
    """Largest divisor of T whose double-buffered blocks fit the VMEM budget."""
    # Resident across the whole grid: recurrent weights (Pallas double-buffers
    # by default even with a constant index map) + f32-equivalent state scratch.
    fixed = 2 * H * H4 * w_isz + Nb * (H4 + 3 * H) * 4
    # Per-timestep streamed blocks (xg in + outputs out), double-buffered.
    per_t = 2 * Nb * (H4 * xg_isz + H * out_isz)
    avail = budget_bytes - fixed
    if avail < per_t:
        raise ValueError(
            f"VMEM budget {budget_bytes} B too small for Nb={Nb}, H={H} "
            f"(fixed={fixed} B, per-timestep={per_t} B); reduce batch_block "
            f"or raise vmem_budget_bytes.")
    max_tb = int(avail // per_t)
    for d in range(T, 0, -1):
        if T % d == 0 and d <= max_tb:
            return d
    return 1


def basic_lstm_forward(inputs, w_in, b_in, w_h, b_h, *,
                       tau=2.0, v_threshold=0.1, v_reset=0.0,
                       time_block=None, batch_block=None,
                       recurrent_dtype=jnp.bfloat16,
                       stream_dtype=jnp.bfloat16,
                       out_dtype=jnp.bfloat16,
                       vmem_budget_bytes=44 * (1 << 20),
                       vmem_limit_bytes=64 * (1 << 20)):
    """inputs: (T, N, input_size) f32.

    Returns (outputs (T,N,H) in out_dtype, (h (N,H) f32, c (N,H) f32)).

    Defaults are the performance configuration (bf16 recurrent weights / xg
    stream / outputs; accumulation and membrane state stay f32).  Pass
    recurrent_dtype=stream_dtype=out_dtype=jnp.float32 for bit-faithful f32.
    Note: spike outputs are exactly {0,1} in either dtype, but bf16 rounding
    of weights / xg near v_threshold can flip individual spikes vs f32.

    Tiling guidance: on v5e/v6e keep batch_block=None (one batch tile; 1 TC);
    on v7x pass batch_block <= N // 2 so the "parallel" axis spans both
    TensorCores, and use a VMEM budget sized for 64 MiB per core.  For best
    store density prefer H % 128 == 0 and batch_block % 8 == 0 (full-dim
    blocks remain correct either way).
    """
    T, N, I = inputs.shape
    H4 = w_in.shape[0]
    H = H4 // 4

    x = inputs.astype(jnp.float32)

    # ---- Hoisted, non-recurrent input projection: one big (T*N, I) x (I, 4H)
    # matmul + bias as plain XLA (fully parallel, fills the MXU).
    bias = (b_in + b_h).astype(jnp.float32)
    xg = jnp.reshape(jnp.reshape(x, (T * N, I)) @ w_in.astype(jnp.float32).T,
                     (T, N, H4)) + bias
    xg = xg.astype(stream_dtype)        # dominant HBM stream of the kernel
    # TODO(synk): on v5e, fusing this projection into the kernel pipeline
    # (compute block tb+1 while the recurrence runs over tb) would save one
    # HBM round trip of the xg tensor.

    # ---- Pre-transposed recurrent weights: (H, 4H), 4H lane-dense, resident.
    whT = w_h.astype(jnp.float32).T.astype(recurrent_dtype)

    # ---- Tiling: no silent full-array fallbacks; bad values raise.
    if batch_block is None:
        Nb = N
    else:
        if N % batch_block != 0:
            raise ValueError(f"batch_block={batch_block} must divide N={N}")
        Nb = batch_block

    xg_isz = jnp.dtype(stream_dtype).itemsize
    out_isz = jnp.dtype(out_dtype).itemsize
    w_isz = jnp.dtype(recurrent_dtype).itemsize
    if time_block is None:
        Tb = _pick_time_block(T, Nb, H, H4, xg_isz, out_isz, w_isz,
                              vmem_budget_bytes)
    else:
        if T % time_block != 0:
            raise ValueError(f"time_block={time_block} must divide T={T}")
        Tb = time_block

    kernel = functools.partial(
        _snn_lstm_kernel, time_block=Tb, hidden_size=H,
        inv_tau=float(1.0 / tau), decay=float(1.0 - 1.0 / tau),
        reset_inc=float(v_reset / tau), v_th=float(v_threshold),
        v_reset=float(v_reset))

    grid = (N // Nb, T // Tb)
    grid_spec = pltpu.PrefetchScalarGridSpec(
        num_scalar_prefetch=0,
        grid=grid,
        in_specs=[
            # Precomputed gate contributions for this (batch tile, time block).
            pl.BlockSpec((Tb, Nb, H4), lambda nb, tb: (tb, nb, 0)),
            # Recurrent weights, resident (constant index map -> no re-DMA).
            # On v7x (64 MiB/TC) this can additionally use
            # pipeline_mode=pl.Buffered(1) to drop the second weight buffer.
            pl.BlockSpec((H, H4), lambda nb, tb: (0, 0)),
        ],
        out_specs=[
            pl.BlockSpec((Tb, Nb, H), lambda nb, tb: (tb, nb, 0)),   # outputs
            pl.BlockSpec((Nb, H), lambda nb, tb: (nb, 0)),           # final c
        ],
        scratch_shapes=[
            pltpu.VMEM((Nb, H), recurrent_dtype),   # h carry (matmul LHS dtype)
            pltpu.VMEM((Nb, H), jnp.float32),       # c carry
            pltpu.VMEM((Nb, H4), jnp.float32),      # fused i/o/f/cs membranes
            pltpu.VMEM((Nb, H), jnp.float32),       # ct membrane state
        ],
    )

    outputs, c_t = pl.pallas_call(
        kernel,
        out_shape=(jax.ShapeDtypeStruct((T, N, H), out_dtype),
                   jax.ShapeDtypeStruct((N, H), jnp.float32)),
        grid_spec=grid_spec,
        compiler_params=pltpu.CompilerParams(
            # Batch tiles are independent (2nd TC on v7x); the time axis
            # carries the recurrence and must stay sequential.
            dimension_semantics=("parallel", "arbitrary"),
            vmem_limit_bytes=int(vmem_limit_bytes)),
    )(xg, whT)

    h_t = outputs[-1].astype(jnp.float32)   # exact: spike products are 0/1
    return outputs, (h_t, c_t)


def _reference_forward(inputs, w_in, b_in, w_h, b_h,
                       *, tau=2.0, v_threshold=0.1, v_reset=0.0):
    """Pure-JAX reference mirroring the PyTorch module, for verification."""
    T, N, I = inputs.shape
    H = w_h.shape[1]

    def lif(v, x):
        v = v + (x - (v - v_reset)) / tau
        s = (v >= v_threshold).astype(jnp.float32)
        return s, (1.0 - s) * v + s * v_reset

    def step(carry, x_t):
        h, c, vi, vf, vo, vcs, vct = carry
        gates = x_t @ w_in.T + b_in + h @ w_h.T + b_h
        i_g, o_g, f_g, cs_g = (gates[:, 0:H], gates[:, H:2 * H],
                               gates[:, 2 * H:3 * H], gates[:, 3 * H:4 * H])
        s_f, vf = lif(vf, f_g)
        s_i, vi = lif(vi, i_g)
        s_cs, vcs = lif(vcs, cs_g)
        c = s_f * c + s_i * s_cs
        s_o, vo = lif(vo, o_g)
        s_ct, vct = lif(vct, c)
        h = s_o * s_ct
        return (h, c, vi, vf, vo, vcs, vct), h

    z = jnp.zeros((N, H), jnp.float32)
    vr = jnp.full((N, H), v_reset, jnp.float32)
    init = (z, z, vr, vr, vr, vr, vr)
    (h, c, *_), outs = jax.lax.scan(step, init, inputs)
    return outs, (h, c)


if __name__ == "__main__":
    # Small deterministic example: T=8 timesteps, N=8 batch, input=16, hidden=32.
    T, N, INPUT, HIDDEN = 8, 8, 16, 32
    key = jax.random.PRNGKey(0)
    k_x, k_wi, k_bi, k_wh, k_bh = jax.random.split(key, 5)

    # nn.Linear-style uniform init bounds (deterministic, in-script).
    bound_i = 1.0 / (INPUT ** 0.5)
    bound_h = 1.0 / (HIDDEN ** 0.5)
    x = jax.random.normal(k_x, (T, N, INPUT), jnp.float32)
    w_in = jax.random.uniform(k_wi, (4 * HIDDEN, INPUT), jnp.float32, -bound_i, bound_i)
    b_in = jax.random.uniform(k_bi, (4 * HIDDEN,), jnp.float32, -bound_i, bound_i)
    w_h = jax.random.uniform(k_wh, (4 * HIDDEN, HIDDEN), jnp.float32, -bound_h, bound_h)
    b_h = jax.random.uniform(k_bh, (4 * HIDDEN,), jnp.float32, -bound_h, bound_h)

    # 1) Default performance path: bf16 weights / xg stream / outputs, Tb
    #    auto-sized from the VMEM budget.
    out_bf, (h_bf, c_bf) = basic_lstm_forward(
        x, w_in, b_in, w_h, b_h,
        tau=2.0, v_threshold=0.1, v_reset=0.0)
    jax.block_until_ready((out_bf, h_bf, c_bf))

    # 2) f32 path (multiple time blocks) for bit-faithful verification against
    #    the pure-JAX reference; also exercises cross-time-block state carry
    #    and the guarded final-c store.
    out_f32, (h_f32, c_f32) = basic_lstm_forward(
        x, w_in, b_in, w_h, b_h,
        tau=2.0, v_threshold=0.1, v_reset=0.0,
        time_block=4, batch_block=N,
        recurrent_dtype=jnp.float32, stream_dtype=jnp.float32,
        out_dtype=jnp.float32)
    jax.block_until_ready((out_f32, h_f32, c_f32))

    ref_out, (ref_h, ref_c) = _reference_forward(
        x, w_in, b_in, w_h, b_h, tau=2.0, v_threshold=0.1, v_reset=0.0)

    assert out_f32.shape == (T, N, HIDDEN)
    # Tolerance covers ulp-level reassociation in the rewritten LIF update.
    assert jnp.allclose(out_f32, ref_out, atol=1e-5)
    assert jnp.allclose(h_f32, ref_h, atol=1e-5)
    assert jnp.allclose(c_f32, ref_c, atol=1e-5)

    # bf16 path: the hard-threshold nonlinearity makes allclose the wrong
    # metric (a 1-ulp rounding difference becomes a 0<->1 spike flip), so we
    # check structural exactness (all outputs are exactly 0 or 1) and compute
    # an informational spike-mismatch rate vs the f32 reference.
    assert out_bf.shape == (T, N, HIDDEN)
    out_bf_f32 = out_bf.astype(jnp.float32)
    assert bool(jnp.all((out_bf_f32 == 0.0) | (out_bf_f32 == 1.0)))
    _spike_mismatch_rate = float(jnp.mean(jnp.abs(out_bf_f32 - ref_out) > 0.5))
    assert 0.0 <= _spike_mismatch_rate <= 1.0
    assert bool(jnp.all(jnp.isfinite(c_bf)))

    print("KERNEL_OK")
</pallas_src>

<mosaic_0001>
module attributes {stable_mosaic.version = 11 : i64} {
  func.func @_snn_lstm_kernel(%arg0: i32, %arg1: i32, %arg2: memref<8x8x128xbf16, #tpu.memory_space<vmem>>, %arg3: memref<32x128xbf16, #tpu.memory_space<vmem>>, %arg4: memref<8x8x32xbf16, #tpu.memory_space<vmem>>, %arg5: memref<8x32xf32, #tpu.memory_space<vmem>>, %arg6: memref<8x32xbf16, #tpu.memory_space<vmem>>, %arg7: memref<8x32xf32, #tpu.memory_space<vmem>>, %arg8: memref<8x128xf32, #tpu.memory_space<vmem>>, %arg9: memref<8x32xf32, #tpu.memory_space<vmem>>) attributes {dimension_semantics = [#tpu.dimension_semantics<parallel>, #tpu.dimension_semantics<arbitrary>], iteration_bounds = array<i64: 1, 1>, scalar_prefetch = 0 : i64, scratch_operands = 4 : i64, tpu.core_type = #tpu.core_type<tc>, window_params = [{transform_indices = @transform_0, window_bounds = array<i64: 8, 8, 128>}, {pipeline_mode = #tpu.pipeline_mode<synchronous>, transform_indices = @transform_1, window_bounds = array<i64: 32, 128>}, {transform_indices = @transform_2, window_bounds = array<i64: 8, 8, 32>}, {transform_indices = @transform_3, window_bounds = array<i64: 8, 32>}]} {
    %c0_i32 = arith.constant 0 : i32
    %0 = arith.cmpi eq, %arg1, %c0_i32 : i32
    %1 = arith.extui %0 : i1 to i32
    %c0_i32_0 = arith.constant 0 : i32
    %2 = arith.cmpi ne, %1, %c0_i32_0 : i32
    scf.if %2 {
      %cst_252 = arith.constant 0.000000e+00 : bf16
      %439 = vector.broadcast %cst_252 : bf16 to vector<8x32xbf16>
      %c0_253 = arith.constant 0 : index
      %c0_254 = arith.constant 0 : index
      %440 = vector.load %arg6[%c0_253, %c0_254] : memref<8x32xbf16, #tpu.memory_space<vmem>>, vector<8x32xbf16>
      tpu.vector_store %arg6[%c0_253, %c0_254], %439 {strides = array<i32>} : memref<8x32xbf16, #tpu.memory_space<vmem>>, vector<8x32xbf16>,
      %cst_255 = arith.constant 0.000000e+00 : f32
      %441 = vector.broadcast %cst_255 : f32 to vector<8x32xf32>
      %c0_256 = arith.constant 0 : index
      %c0_257 = arith.constant 0 : index
      %442 = vector.load %arg7[%c0_256, %c0_257] : memref<8x32xf32, #tpu.memory_space<vmem>>, vector<8x32xf32>
      tpu.vector_store %arg7[%c0_256, %c0_257], %441 {strides = array<i32>} : memref<8x32xf32, #tpu.memory_space<vmem>>, vector<8x32xf32>,
      %cst_258 = arith.constant 0.000000e+00 : f32
      %443 = vector.broadcast %cst_258 : f32 to vector<8x128xf32>
      %c0_259 = arith.constant 0 : index
      %c0_260 = arith.constant 0 : index
      %444 = vector.load %arg8[%c0_259, %c0_260] : memref<8x128xf32, #tpu.memory_space<vmem>>, vector<8x128xf32>
      tpu.vector_store %arg8[%c0_259, %c0_260], %443 {strides = array<i32>} : memref<8x128xf32, #tpu.memory_space<vmem>>, vector<8x128xf32>,
      %cst_261 = arith.constant 0.000000e+00 : f32
      %445 = vector.broadcast %cst_261 : f32 to vector<8x32xf32>
      %c0_262 = arith.constant 0 : index
      %c0_263 = arith.constant 0 : index
      %446 = vector.load %arg9[%c0_262, %c0_263] : memref<8x32xf32, #tpu.memory_space<vmem>>, vector<8x32xf32>
      tpu.vector_store %arg9[%c0_262, %c0_263], %445 {strides = array<i32>} : memref<8x32xf32, #tpu.memory_space<vmem>>, vector<8x32xf32>,
    } else {
    }
    %c0 = arith.constant 0 : index
    %c0_1 = arith.constant 0 : index
    %3 = vector.load %arg3[%c0, %c0_1] : memref<32x128xbf16, #tpu.memory_space<vmem>>, vector<32x128xbf16>
    %c0_i32_2 = arith.constant 0 : i32
    %c0_3 = arith.constant 0 : index
    %c0_4 = arith.constant 0 : index
    %4 = vector.load %arg6[%c0_3, %c0_4] : memref<8x32xbf16, #tpu.memory_space<vmem>>, vector<8x32xbf16>
    %c0_5 = arith.constant 0 : index
    %c0_6 = arith.constant 0 : index
    %5 = vector.load %arg7[%c0_5, %c0_6] : memref<8x32xf32, #tpu.memory_space<vmem>>, vector<8x32xf32>
    %6 = arith.index_cast %c0_i32_2 : i32 to index
    %c0_7 = arith.constant 0 : index
    %c0_8 = arith.constant 0 : index
    %7 = vector.load %arg2[%6, %c0_7, %c0_8] : memref<8x8x128xbf16, #tpu.memory_space<vmem>>, vector<1x8x128xbf16>
    %8 = vector.shape_cast %7 : vector<1x8x128xbf16> to vector<8x128xbf16>
    %9 = arith.extf %8 : vector<8x128xbf16> to vector<8x128xf32>
    %cst = arith.constant dense<0.000000e+00> : vector<8x128xf32>
    %10 = tpu.matmul %4, %3, %cst {dimension_numbers = #tpu.dot_dimension_numbers<[1], [0], [0], [1], [0, 0, 1, 1], [], []>} : vector<8x32xbf16>, vector<32x128xbf16>, vector<8x128xf32> -> vector<8x128xf32>
    %11 = arith.addf %9, %10 : vector<8x128xf32>
    %c0_9 = arith.constant 0 : index
    %c0_10 = arith.constant 0 : index
    %12 = vector.load %arg8[%c0_9, %c0_10] : memref<8x128xf32, #tpu.memory_space<vmem>>, vector<8x128xf32>
    %cst_11 = arith.constant 5.000000e-01 : f32
    %13 = vector.broadcast %cst_11 : f32 to vector<8x128xf32>
    %14 = arith.mulf %12, %13 : vector<8x128xf32>
    %cst_12 = arith.constant 5.000000e-01 : f32
    %15 = vector.broadcast %cst_12 : f32 to vector<8x128xf32>
    %16 = arith.mulf %11, %15 : vector<8x128xf32>
    %17 = arith.addf %14, %16 : vector<8x128xf32>
    %cst_13 = arith.constant 0.000000e+00 : f32
    %18 = vector.broadcast %cst_13 : f32 to vector<8x128xf32>
    %19 = arith.addf %17, %18 : vector<8x128xf32>
    %cst_14 = arith.constant 1.000000e-01 : f32
    %20 = vector.broadcast %cst_14 : f32 to vector<8x128xf32>
    %21 = arith.cmpf oge, %19, %20 : vector<8x128xf32>
    %22 = arith.extui %21 : vector<8x128xi1> to vector<8x128xi32>
    %23 = arith.sitofp %22 : vector<8x128xi32> to vector<8x128xf32>
    %cst_15 = arith.constant 0.000000e+00 : f32
    %24 = vector.broadcast %cst_15 : f32 to vector<8x128xf32>
    %25 = arith.select %21, %24, %19 : vector<8x128xi1>, vector<8x128xf32>
    %c0_16 = arith.constant 0 : index
    %c0_17 = arith.constant 0 : index
    %26 = vector.load %arg8[%c0_16, %c0_17] : memref<8x128xf32, #tpu.memory_space<vmem>>, vector<8x128xf32>
    tpu.vector_store %arg8[%c0_16, %c0_17], %25 {strides = array<i32>} : memref<8x128xf32, #tpu.memory_space<vmem>>, vector<8x128xf32>,
    %27 = vector.extract_strided_slice %23 {offsets = [0, 0], sizes = [8, 32], strides = [1, 1]} : vector<8x128xf32> to vector<8x32xf32>
    %28 = vector.extract_strided_slice %23 {offsets = [0, 32], sizes = [8, 32], strides = [1, 1]} : vector<8x128xf32> to vector<8x32xf32>
    %29 = vector.extract_strided_slice %23 {offsets = [0, 64], sizes = [8, 32], strides = [1, 1]} : vector<8x128xf32> to vector<8x32xf32>
    %30 = vector.extract_strided_slice %23 {offsets = [0, 96], sizes = [8, 32], strides = [1, 1]} : vector<8x128xf32> to vector<8x32xf32>
    %31 = arith.mulf %29, %5 : vector<8x32xf32>
    %32 = arith.mulf %27, %30 : vector<8x32xf32>
    %33 = arith.addf %31, %32 : vector<8x32xf32>
    %c0_18 = arith.constant 0 : index
    %c0_19 = arith.constant 0 : index
    %34 = vector.load %arg9[%c0_18, %c0_19] : memref<8x32xf32, #tpu.memory_space<vmem>>, vector<8x32xf32>
    %cst_20 = arith.constant 5.000000e-01 : f32
    %35 = vector.broadcast %cst_20 : f32 to vector<8x32xf32>
    %36 = arith.mulf %34, %35 : vector<8x32xf32>
    %cst_21 = arith.constant 5.000000e-01 : f32
    %37 = vector.broadcast %cst_21 : f32 to vector<8x32xf32>
    %38 = arith.mulf %33, %37 : vector<8x32xf32>
    %39 = arith.addf %36, %38 : vector<8x32xf32>
    %cst_22 = arith.constant 0.000000e+00 : f32
    %40 = vector.broadcast %cst_22 : f32 to vector<8x32xf32>
    %41 = arith.addf %39, %40 : vector<8x32xf32>
    %cst_23 = arith.constant 1.000000e-01 : f32
    %42 = vector.broadcast %cst_23 : f32 to vector<8x32xf32>
    %43 = arith.cmpf oge, %41, %42 : vector<8x32xf32>
    %44 = arith.extui %43 : vector<8x32xi1> to vector<8x32xi32>
    %45 = arith.sitofp %44 : vector<8x32xi32> to vector<8x32xf32>
    %cst_24 = arith.constant 0.000000e+00 : f32
    %46 = vector.broadcast %cst_24 : f32 to vector<8x32xf32>
    %47 = arith.select %43, %46, %41 : vector<8x32xi1>, vector<8x32xf32>
    %c0_25 = arith.constant 0 : index
    %c0_26 = arith.constant 0 : index
    %48 = vector.load %arg9[%c0_25, %c0_26] : memref<8x32xf32, #tpu.memory_space<vmem>>, vector<8x32xf32>
    tpu.vector_store %arg9[%c0_25, %c0_26], %47 {strides = array<i32>} : memref<8x32xf32, #tpu.memory_space<vmem>>, vector<8x32xf32>,
    %49 = arith.mulf %28, %45 : vector<8x32xf32>
    %50 = arith.truncf %49 : vector<8x32xf32> to vector<8x32xbf16>
    %c0_27 = arith.constant 0 : index
    %c0_28 = arith.constant 0 : index
    %51 = vector.load %arg6[%c0_27, %c0_28] : memref<8x32xbf16, #tpu.memory_space<vmem>>, vector<8x32xbf16>
    tpu.vector_store %arg6[%c0_27, %c0_28], %50 {strides = array<i32>} : memref<8x32xbf16, #tpu.memory_space<vmem>>, vector<8x32xbf16>,
    %c0_29 = arith.constant 0 : index
    %c0_30 = arith.constant 0 : index
    %52 = vector.load %arg7[%c0_29, %c0_30] : memref<8x32xf32, #tpu.memory_space<vmem>>, vector<8x32xf32>
    tpu.vector_store %arg7[%c0_29, %c0_30], %33 {strides = array<i32>} : memref<8x32xf32, #tpu.memory_space<vmem>>, vector<8x32xf32>,
    %53 = arith.truncf %49 : vector<8x32xf32> to vector<8x32xbf16>
    %54 = arith.index_cast %c0_i32_2 : i32 to index
    %c0_31 = arith.constant 0 : index
    %c0_32 = arith.constant 0 : index
    %55 = vector.load %arg4[%54, %c0_31, %c0_32] : memref<8x8x32xbf16, #tpu.memory_space<vmem>>, vector<1x8x32xbf16>
    %56 = vector.shape_cast %55 : vector<1x8x32xbf16> to vector<8x32xbf16>
    %57 = vector.shape_cast %53 : vector<8x32xbf16> to vector<1x8x32xbf16>
    tpu.vector_store %arg4[%54, %c0_31, %c0_32], %57 {strides = array<i32>} : memref<8x8x32xbf16, #tpu.memory_space<vmem>>, vector<1x8x32xbf16>,
    %c1_i32 = arith.constant 1 : i32
    %c0_33 = arith.constant 0 : index
    %c0_34 = arith.constant 0 : index
    %58 = vector.load %arg6[%c0_33, %c0_34] : memref<8x32xbf16, #tpu.memory_space<vmem>>, vector<8x32xbf16>
    %c0_35 = arith.constant 0 : index
    %c0_36 = arith.constant 0 : index
    %59 = vector.load %arg7[%c0_35, %c0_36] : memref<8x32xf32, #tpu.memory_space<vmem>>, vector<8x32xf32>
    %60 = arith.index_cast %c1_i32 : i32 to index
    %c0_37 = arith.constant 0 : index
    %c0_38 = arith.constant 0 : index
    %61 = vector.load %arg2[%60, %c0_37, %c0_38] : memref<8x8x128xbf16, #tpu.memory_space<vmem>>, vector<1x8x128xbf16>
    %62 = vector.shape_cast %61 : vector<1x8x128xbf16> to vector<8x128xbf16>
    %63 = arith.extf %62 : vector<8x128xbf16> to vector<8x128xf32>
    %cst_39 = arith.constant dense<0.000000e+00> : vector<8x128xf32>
    %64 = tpu.matmul %58, %3, %cst_39 {dimension_numbers = #tpu.dot_dimension_numbers<[1], [0], [0], [1], [0, 0, 1, 1], [], []>} : vector<8x32xbf16>, vector<32x128xbf16>, vector<8x128xf32> -> vector<8x128xf32>
    %65 = arith.addf %63, %64 : vector<8x128xf32>
    %c0_40 = arith.constant 0 : index
    %c0_41 = arith.constant 0 : index
    %66 = vector.load %arg8[%c0_40, %c0_41] : memref<8x128xf32, #tpu.memory_space<vmem>>, vector<8x128xf32>
    %cst_42 = arith.constant 5.000000e-01 : f32
    %67 = vector.broadcast %cst_42 : f32 to vector<8x128xf32>
    %68 = arith.mulf %66, %67 : vector<8x128xf32>
    %cst_43 = arith.constant 5.000000e-01 : f32
    %69 = vector.broadcast %cst_43 : f32 to vector<8x128xf32>
    %70 = arith.mulf %65, %69 : vector<8x128xf32>
    %71 = arith.addf %68, %70 : vector<8x128xf32>
    %cst_44 = arith.constant 0.000000e+00 : f32
    %72 = vector.broadcast %cst_44 : f32 to vector<8x128xf32>
    %73 = arith.addf %71, %72 : vector<8x128xf32>
    %cst_45 = arith.constant 1.000000e-01 : f32
    %74 = vector.broadcast %cst_45 : f32 to vector<8x128xf32>
    %75 = arith.cmpf oge, %73, %74 : vector<8x128xf32>
    %76 = arith.extui %75 : vector<8x128xi1> to vector<8x128xi32>
    %77 = arith.sitofp %76 : vector<8x128xi32> to vector<8x128xf32>
    %cst_46 = arith.constant 0.000000e+00 : f32
    %78 = vector.broadcast %cst_46 : f32 to vector<8x128xf32>
    %79 = arith.select %75, %78, %73 : vector<8x128xi1>, vector<8x128xf32>
    %c0_47 = arith.constant 0 : index
    %c0_48 = arith.constant 0 : index
    %80 = vector.load %arg8[%c0_47, %c0_48] : memref<8x128xf32, #tpu.memory_space<vmem>>, vector<8x128xf32>
    tpu.vector_store %arg8[%c0_47, %c0_48], %79 {strides = array<i32>} : memref<8x128xf32, #tpu.memory_space<vmem>>, vector<8x128xf32>,
    %81 = vector.extract_strided_slice %77 {offsets = [0, 0], sizes = [8, 32], strides = [1, 1]} : vector<8x128xf32> to vector<8x32xf32>
    %82 = vector.extract_strided_slice %77 {offsets = [0, 32], sizes = [8, 32], strides = [1, 1]} : vector<8x128xf32> to vector<8x32xf32>
    %83 = vector.extract_strided_slice %77 {offsets = [0, 64], sizes = [8, 32], strides = [1, 1]} : vector<8x128xf32> to vector<8x32xf32>
    %84 = vector.extract_strided_slice %77 {offsets = [0, 96], sizes = [8, 32], strides = [1, 1]} : vector<8x128xf32> to vector<8x32xf32>
    %85 = arith.mulf %83, %59 : vector<8x32xf32>
    %86 = arith.mulf %81, %84 : vector<8x32xf32>
    %87 = arith.addf %85, %86 : vector<8x32xf32>
    %c0_49 = arith.constant 0 : index
    %c0_50 = arith.constant 0 : index
    %88 = vector.load %arg9[%c0_49, %c0_50] : memref<8x32xf32, #tpu.memory_space<vmem>>, vector<8x32xf32>
    %cst_51 = arith.constant 5.000000e-01 : f32
    %89 = vector.broadcast %cst_51 : f32 to vector<8x32xf32>
    %90 = arith.mulf %88, %89 : vector<8x32xf32>
    %cst_52 = arith.constant 5.000000e-01 : f32
    %91 = vector.broadcast %cst_52 : f32 to vector<8x32xf32>
    %92 = arith.mulf %87, %91 : vector<8x32xf32>
    %93 = arith.addf %90, %92 : vector<8x32xf32>
    %cst_53 = arith.constant 0.000000e+00 : f32
    %94 = vector.broadcast %cst_53 : f32 to vector<8x32xf32>
    %95 = arith.addf %93, %94 : vector<8x32xf32>
    %cst_54 = arith.constant 1.000000e-01 : f32
    %96 = vector.broadcast %cst_54 : f32 to vector<8x32xf32>
    %97 = arith.cmpf oge, %95, %96 : vector<8x32xf32>
    %98 = arith.extui %97 : vector<8x32xi1> to vector<8x32xi32>
    %99 = arith.sitofp %98 : vector<8x32xi32> to vector<8x32xf32>
    %cst_55 = arith.constant 0.000000e+00 : f32
    %100 = vector.broadcast %cst_55 : f32 to vector<8x32xf32>
    %101 = arith.select %97, %100, %95 : vector<8x32xi1>, vector<8x32xf32>
    %c0_56 = arith.constant 0 : index
    %c0_57 = arith.constant 0 : index
    %102 = vector.load %arg9[%c0_56, %c0_57] : memref<8x32xf32, #tpu.memory_space<vmem>>, vector<8x32xf32>
    tpu.vector_store %arg9[%c0_56, %c0_57], %101 {strides = array<i32>} : memref<8x32xf32, #tpu.memory_space<vmem>>, vector<8x32xf32>,
    %103 = arith.mulf %82, %99 : vector<8x32xf32>
    %104 = arith.truncf %103 : vector<8x32xf32> to vector<8x32xbf16>
    %c0_58 = arith.constant 0 : index
    %c0_59 = arith.constant 0 : index
    %105 = vector.load %arg6[%c0_58, %c0_59] : memref<8x32xbf16, #tpu.memory_space<vmem>>, vector<8x32xbf16>
    tpu.vector_store %arg6[%c0_58, %c0_59], %104 {strides = array<i32>} : memref<8x32xbf16, #tpu.memory_space<vmem>>, vector<8x32xbf16>,
    %c0_60 = arith.constant 0 : index
    %c0_61 = arith.constant 0 : index
    %106 = vector.load %arg7[%c0_60, %c0_61] : memref<8x32xf32, #tpu.memory_space<vmem>>, vector<8x32xf32>
    tpu.vector_store %arg7[%c0_60, %c0_61], %87 {strides = array<i32>} : memref<8x32xf32, #tpu.memory_space<vmem>>, vector<8x32xf32>,
    %107 = arith.truncf %103 : vector<8x32xf32> to vector<8x32xbf16>
    %108 = arith.index_cast %c1_i32 : i32 to index
    %c0_62 = arith.constant 0 : index
    %c0_63 = arith.constant 0 : index
    %109 = vector.load %arg4[%108, %c0_62, %c0_63] : memref<8x8x32xbf16, #tpu.memory_space<vmem>>, vector<1x8x32xbf16>
    %110 = vector.shape_cast %109 : vector<1x8x32xbf16> to vector<8x32xbf16>
    %111 = vector.shape_cast %107 : vector<8x32xbf16> to vector<1x8x32xbf16>
    tpu.vector_store %arg4[%108, %c0_62, %c0_63], %111 {strides = array<i32>} : memref<8x8x32xbf16, #tpu.memory_space<vmem>>, vector<1x8x32xbf16>,
    %c2_i32 = arith.constant 2 : i32
    %c0_64 = arith.constant 0 : index
    %c0_65 = arith.constant 0 : index
    %112 = vector.load %arg6[%c0_64, %c0_65] : memref<8x32xbf16, #tpu.memory_space<vmem>>, vector<8x32xbf16>
    %c0_66 = arith.constant 0 : index
    %c0_67 = arith.constant 0 : index
    %113 = vector.load %arg7[%c0_66, %c0_67] : memref<8x32xf32, #tpu.memory_space<vmem>>, vector<8x32xf32>
    %114 = arith.index_cast %c2_i32 : i32 to index
    %c0_68 = arith.constant 0 : index
    %c0_69 = arith.constant 0 : index
    %115 = vector.load %arg2[%114, %c0_68, %c0_69] : memref<8x8x128xbf16, #tpu.memory_space<vmem>>, vector<1x8x128xbf16>
    %116 = vector.shape_cast %115 : vector<1x8x128xbf16> to vector<8x128xbf16>
    %117 = arith.extf %116 : vector<8x128xbf16> to vector<8x128xf32>
    %cst_70 = arith.constant dense<0.000000e+00> : vector<8x128xf32>
    %118 = tpu.matmul %112, %3, %cst_70 {dimension_numbers = #tpu.dot_dimension_numbers<[1], [0], [0], [1], [0, 0, 1, 1], [], []>} : vector<8x32xbf16>, vector<32x128xbf16>, vector<8x128xf32> -> vector<8x128xf32>
    %119 = arith.addf %117, %118 : vector<8x128xf32>
    %c0_71 = arith.constant 0 : index
    %c0_72 = arith.constant 0 : index
    %120 = vector.load %arg8[%c0_71, %c0_72] : memref<8x128xf32, #tpu.memory_space<vmem>>, vector<8x128xf32>
    %cst_73 = arith.constant 5.000000e-01 : f32
    %121 = vector.broadcast %cst_73 : f32 to vector<8x128xf32>
    %122 = arith.mulf %120, %121 : vector<8x128xf32>
    %cst_74 = arith.constant 5.000000e-01 : f32
    %123 = vector.broadcast %cst_74 : f32 to vector<8x128xf32>
    %124 = arith.mulf %119, %123 : vector<8x128xf32>
    %125 = arith.addf %122, %124 : vector<8x128xf32>
    %cst_75 = arith.constant 0.000000e+00 : f32
    %126 = vector.broadcast %cst_75 : f32 to vector<8x128xf32>
    %127 = arith.addf %125, %126 : vector<8x128xf32>
    %cst_76 = arith.constant 1.000000e-01 : f32
    %128 = vector.broadcast %cst_76 : f32 to vector<8x128xf32>
    %129 = arith.cmpf oge, %127, %128 : vector<8x128xf32>
    %130 = arith.extui %129 : vector<8x128xi1> to vector<8x128xi32>
    %131 = arith.sitofp %130 : vector<8x128xi32> to vector<8x128xf32>
    %cst_77 = arith.constant 0.000000e+00 : f32
    %132 = vector.broadcast %cst_77 : f32 to vector<8x128xf32>
    %133 = arith.select %129, %132, %127 : vector<8x128xi1>, vector<8x128xf32>
    %c0_78 = arith.constant 0 : index
    %c0_79 = arith.constant 0 : index
    %134 = vector.load %arg8[%c0_78, %c0_79] : memref<8x128xf32, #tpu.memory_space<vmem>>, vector<8x128xf32>
    tpu.vector_store %arg8[%c0_78, %c0_79], %133 {strides = array<i32>} : memref<8x128xf32, #tpu.memory_space<vmem>>, vector<8x128xf32>,
    %135 = vector.extract_strided_slice %131 {offsets = [0, 0], sizes = [8, 32], strides = [1, 1]} : vector<8x128xf32> to vector<8x32xf32>
    %136 = vector.extract_strided_slice %131 {offsets = [0, 32], sizes = [8, 32], strides = [1, 1]} : vector<8x128xf32> to vector<8x32xf32>
    %137 = vector.extract_strided_slice %131 {offsets = [0, 64], sizes = [8, 32], strides = [1, 1]} : vector<8x128xf32> to vector<8x32xf32>
    %138 = vector.extract_strided_slice %131 {offsets = [0, 96], sizes = [8, 32], strides = [1, 1]} : vector<8x128xf32> to vector<8x32xf32>
    %139 = arith.mulf %137, %113 : vector<8x32xf32>
    %140 = arith.mulf %135, %138 : vector<8x32xf32>
    %141 = arith.addf %139, %140 : vector<8x32xf32>
    %c0_80 = arith.constant 0 : index
    %c0_81 = arith.constant 0 : index
    %142 = vector.load %arg9[%c0_80, %c0_81] : memref<8x32xf32, #tpu.memory_space<vmem>>, vector<8x32xf32>
    %cst_82 = arith.constant 5.000000e-01 : f32
    %143 = vector.broadcast %cst_82 : f32 to vector<8x32xf32>
    %144 = arith.mulf %142, %143 : vector<8x32xf32>
    %cst_83 = arith.constant 5.000000e-01 : f32
    %145 = vector.broadcast %cst_83 : f32 to vector<8x32xf32>
    %146 = arith.mulf %141, %145 : vector<8x32xf32>
    %147 = arith.addf %144, %146 : vector<8x32xf32>
    %cst_84 = arith.constant 0.000000e+00 : f32
    %148 = vector.broadcast %cst_84 : f32 to vector<8x32xf32>
    %149 = arith.addf %147, %148 : vector<8x32xf32>
    %cst_85 = arith.constant 1.000000e-01 : f32
    %150 = vector.broadcast %cst_85 : f32 to vector<8x32xf32>
    %151 = arith.cmpf oge, %149, %150 : vector<8x32xf32>
    %152 = arith.extui %151 : vector<8x32xi1> to vector<8x32xi32>
    %153 = arith.sitofp %152 : vector<8x32xi32> to vector<8x32xf32>
    %cst_86 = arith.constant 0.000000e+00 : f32
    %154 = vector.broadcast %cst_86 : f32 to vector<8x32xf32>
    %155 = arith.select %151, %154, %149 : vector<8x32xi1>, vector<8x32xf32>
    %c0_87 = arith.constant 0 : index
    %c0_88 = arith.constant 0 : index
    %156 = vector.load %arg9[%c0_87, %c0_88] : memref<8x32xf32, #tpu.memory_space<vmem>>, vector<8x32xf32>
    tpu.vector_store %arg9[%c0_87, %c0_88], %155 {strides = array<i32>} : memref<8x32xf32, #tpu.memory_space<vmem>>, vector<8x32xf32>,
    %157 = arith.mulf %136, %153 : vector<8x32xf32>
    %158 = arith.truncf %157 : vector<8x32xf32> to vector<8x32xbf16>
    %c0_89 = arith.constant 0 : index
    %c0_90 = arith.constant 0 : index
    %159 = vector.load %arg6[%c0_89, %c0_90] : memref<8x32xbf16, #tpu.memory_space<vmem>>, vector<8x32xbf16>
    tpu.vector_store %arg6[%c0_89, %c0_90], %158 {strides = array<i32>} : memref<8x32xbf16, #tpu.memory_space<vmem>>, vector<8x32xbf16>,
    %c0_91 = arith.constant 0 : index
    %c0_92 = arith.constant 0 : index
    %160 = vector.load %arg7[%c0_91, %c0_92] : memref<8x32xf32, #tpu.memory_space<vmem>>, vector<8x32xf32>
    tpu.vector_store %arg7[%c0_91, %c0_92], %141 {strides = array<i32>} : memref<8x32xf32, #tpu.memory_space<vmem>>, vector<8x32xf32>,
    %161 = arith.truncf %157 : vector<8x32xf32> to vector<8x32xbf16>
    %162 = arith.index_cast %c2_i32 : i32 to index
    %c0_93 = arith.constant 0 : index
    %c0_94 = arith.constant 0 : index
    %163 = vector.load %arg4[%162, %c0_93, %c0_94] : memref<8x8x32xbf16, #tpu.memory_space<vmem>>, vector<1x8x32xbf16>
    %164 = vector.shape_cast %163 : vector<1x8x32xbf16> to vector<8x32xbf16>
    %165 = vector.shape_cast %161 : vector<8x32xbf16> to vector<1x8x32xbf16>
    tpu.vector_store %arg4[%162, %c0_93, %c0_94], %165 {strides = array<i32>} : memref<8x8x32xbf16, #tpu.memory_space<vmem>>, vector<1x8x32xbf16>,
    %c3_i32 = arith.constant 3 : i32
    %c0_95 = arith.constant 0 : index
    %c0_96 = arith.constant 0 : index
    %166 = vector.load %arg6[%c0_95, %c0_96] : memref<8x32xbf16, #tpu.memory_space<vmem>>, vector<8x32xbf16>
    %c0_97 = arith.constant 0 : index
    %c0_98 = arith.constant 0 : index
    %167 = vector.load %arg7[%c0_97, %c0_98] : memref<8x32xf32, #tpu.memory_space<vmem>>, vector<8x32xf32>
    %168 = arith.index_cast %c3_i32 : i32 to index
    %c0_99 = arith.constant 0 : index
    %c0_100 = arith.constant 0 : index
    %169 = vector.load %arg2[%168, %c0_99, %c0_100] : memref<8x8x128xbf16, #tpu.memory_space<vmem>>, vector<1x8x128xbf16>
    %170 = vector.shape_cast %169 : vector<1x8x128xbf16> to vector<8x128xbf16>
    %171 = arith.extf %170 : vector<8x128xbf16> to vector<8x128xf32>
    %cst_101 = arith.constant dense<0.000000e+00> : vector<8x128xf32>
    %172 = tpu.matmul %166, %3, %cst_101 {dimension_numbers = #tpu.dot_dimension_numbers<[1], [0], [0], [1], [0, 0, 1, 1], [], []>} : vector<8x32xbf16>, vector<32x128xbf16>, vector<8x128xf32> -> vector<8x128xf32>
    %173 = arith.addf %171, %172 : vector<8x128xf32>
    %c0_102 = arith.constant 0 : index
    %c0_103 = arith.constant 0 : index
    %174 = vector.load %arg8[%c0_102, %c0_103] : memref<8x128xf32, #tpu.memory_space<vmem>>, vector<8x128xf32>
    %cst_104 = arith.constant 5.000000e-01 : f32
    %175 = vector.broadcast %cst_104 : f32 to vector<8x128xf32>
    %176 = arith.mulf %174, %175 : vector<8x128xf32>
    %cst_105 = arith.constant 5.000000e-01 : f32
    %177 = vector.broadcast %cst_105 : f32 to vector<8x128xf32>
    %178 = arith.mulf %173, %177 : vector<8x128xf32>
    %179 = arith.addf %176, %178 : vector<8x128xf32>
    %cst_106 = arith.constant 0.000000e+00 : f32
    %180 = vector.broadcast %cst_106 : f32 to vector<8x128xf32>
    %181 = arith.addf %179, %180 : vector<8x128xf32>
    %cst_107 = arith.constant 1.000000e-01 : f32
    %182 = vector.broadcast %cst_107 : f32 to vector<8x128xf32>
    %183 = arith.cmpf oge, %181, %182 : vector<8x128xf32>
    %184 = arith.extui %183 : vector<8x128xi1> to vector<8x128xi32>
    %185 = arith.sitofp %184 : vector<8x128xi32> to vector<8x128xf32>
    %cst_108 = arith.constant 0.000000e+00 : f32
    %186 = vector.broadcast %cst_108 : f32 to vector<8x128xf32>
    %187 = arith.select %183, %186, %181 : vector<8x128xi1>, vector<8x128xf32>
    %c0_109 = arith.constant 0 : index
    %c0_110 = arith.constant 0 : index
    %188 = vector.load %arg8[%c0_109, %c0_110] : memref<8x128xf32, #tpu.memory_space<vmem>>, vector<8x128xf32>
    tpu.vector_store %arg8[%c0_109, %c0_110], %187 {strides = array<i32>} : memref<8x128xf32, #tpu.memory_space<vmem>>, vector<8x128xf32>,
    %189 = vector.extract_strided_slice %185 {offsets = [0, 0], sizes = [8, 32], strides = [1, 1]} : vector<8x128xf32> to vector<8x32xf32>
    %190 = vector.extract_strided_slice %185 {offsets = [0, 32], sizes = [8, 32], strides = [1, 1]} : vector<8x128xf32> to vector<8x32xf32>
    %191 = vector.extract_strided_slice %185 {offsets = [0, 64], sizes = [8, 32], strides = [1, 1]} : vector<8x128xf32> to vector<8x32xf32>
    %192 = vector.extract_strided_slice %185 {offsets = [0, 96], sizes = [8, 32], strides = [1, 1]} : vector<8x128xf32> to vector<8x32xf32>
    %193 = arith.mulf %191, %167 : vector<8x32xf32>
    %194 = arith.mulf %189, %192 : vector<8x32xf32>
    %195 = arith.addf %193, %194 : vector<8x32xf32>
    %c0_111 = arith.constant 0 : index
    %c0_112 = arith.constant 0 : index
    %196 = vector.load %arg9[%c0_111, %c0_112] : memref<8x32xf32, #tpu.memory_space<vmem>>, vector<8x32xf32>
    %cst_113 = arith.constant 5.000000e-01 : f32
    %197 = vector.broadcast %cst_113 : f32 to vector<8x32xf32>
    %198 = arith.mulf %196, %197 : vector<8x32xf32>
    %cst_114 = arith.constant 5.000000e-01 : f32
    %199 = vector.broadcast %cst_114 : f32 to vector<8x32xf32>
    %200 = arith.mulf %195, %199 : vector<8x32xf32>
    %201 = arith.addf %198, %200 : vector<8x32xf32>
    %cst_115 = arith.constant 0.000000e+00 : f32
    %202 = vector.broadcast %cst_115 : f32 to vector<8x32xf32>
    %203 = arith.addf %201, %202 : vector<8x32xf32>
    %cst_116 = arith.constant 1.000000e-01 : f32
    %204 = vector.broadcast %cst_116 : f32 to vector<8x32xf32>
    %205 = arith.cmpf oge, %203, %204 : vector<8x32xf32>
    %206 = arith.extui %205 : vector<8x32xi1> to vector<8x32xi32>
    %207 = arith.sitofp %206 : vector<8x32xi32> to vector<8x32xf32>
    %cst_117 = arith.constant 0.000000e+00 : f32
    %208 = vector.broadcast %cst_117 : f32 to vector<8x32xf32>
    %209 = arith.select %205, %208, %203 : vector<8x32xi1>, vector<8x32xf32>
    %c0_118 = arith.constant 0 : index
    %c0_119 = arith.constant 0 : index
    %210 = vector.load %arg9[%c0_118, %c0_119] : memref<8x32xf32, #tpu.memory_space<vmem>>, vector<8x32xf32>
    tpu.vector_store %arg9[%c0_118, %c0_119], %209 {strides = array<i32>} : memref<8x32xf32, #tpu.memory_space<vmem>>, vector<8x32xf32>,
    %211 = arith.mulf %190, %207 : vector<8x32xf32>
    %212 = arith.truncf %211 : vector<8x32xf32> to vector<8x32xbf16>
    %c0_120 = arith.constant 0 : index
    %c0_121 = arith.constant 0 : index
    %213 = vector.load %arg6[%c0_120, %c0_121] : memref<8x32xbf16, #tpu.memory_space<vmem>>, vector<8x32xbf16>
    tpu.vector_store %arg6[%c0_120, %c0_121], %212 {strides = array<i32>} : memref<8x32xbf16, #tpu.memory_space<vmem>>, vector<8x32xbf16>,
    %c0_122 = arith.constant 0 : index
    %c0_123 = arith.constant 0 : index
    %214 = vector.load %arg7[%c0_122, %c0_123] : memref<8x32xf32, #tpu.memory_space<vmem>>, vector<8x32xf32>
    tpu.vector_store %arg7[%c0_122, %c0_123], %195 {strides = array<i32>} : memref<8x32xf32, #tpu.memory_space<vmem>>, vector<8x32xf32>,
    %215 = arith.truncf %211 : vector<8x32xf32> to vector<8x32xbf16>
    %216 = arith.index_cast %c3_i32 : i32 to index
    %c0_124 = arith.constant 0 : index
    %c0_125 = arith.constant 0 : index
    %217 = vector.load %arg4[%216, %c0_124, %c0_125] : memref<8x8x32xbf16, #tpu.memory_space<vmem>>, vector<1x8x32xbf16>
    %218 = vector.shape_cast %217 : vector<1x8x32xbf16> to vector<8x32xbf16>
    %219 = vector.shape_cast %215 : vector<8x32xbf16> to vector<1x8x32xbf16>
    tpu.vector_store %arg4[%216, %c0_124, %c0_125], %219 {strides = array<i32>} : memref<8x8x32xbf16, #tpu.memory_space<vmem>>, vector<1x8x32xbf16>,
    %c4_i32 = arith.constant 4 : i32
    %c0_126 = arith.constant 0 : index
    %c0_127 = arith.constant 0 : index
    %220 = vector.load %arg6[%c0_126, %c0_127] : memref<8x32xbf16, #tpu.memory_space<vmem>>, vector<8x32xbf16>
    %c0_128 = arith.constant 0 : index
    %c0_129 = arith.constant 0 : index
    %221 = vector.load %arg7[%c0_128, %c0_129] : memref<8x32xf32, #tpu.memory_space<vmem>>, vector<8x32xf32>
    %222 = arith.index_cast %c4_i32 : i32 to index
    %c0_130 = arith.constant 0 : index
    %c0_131 = arith.constant 0 : index
    %223 = vector.load %arg2[%222, %c0_130, %c0_131] : memref<8x8x128xbf16, #tpu.memory_space<vmem>>, vector<1x8x128xbf16>
    %224 = vector.shape_cast %223 : vector<1x8x128xbf16> to vector<8x128xbf16>
    %225 = arith.extf %224 : vector<8x128xbf16> to vector<8x128xf32>
    %cst_132 = arith.constant dense<0.000000e+00> : vector<8x128xf32>
    %226 = tpu.matmul %220, %3, %cst_132 {dimension_numbers = #tpu.dot_dimension_numbers<[1], [0], [0], [1], [0, 0, 1, 1], [], []>} : vector<8x32xbf16>, vector<32x128xbf16>, vector<8x128xf32> -> vector<8x128xf32>
    %227 = arith.addf %225, %226 : vector<8x128xf32>
    %c0_133 = arith.constant 0 : index
    %c0_134 = arith.constant 0 : index
    %228 = vector.load %arg8[%c0_133, %c0_134] : memref<8x128xf32, #tpu.memory_space<vmem>>, vector<8x128xf32>
    %cst_135 = arith.constant 5.000000e-01 : f32
    %229 = vector.broadcast %cst_135 : f32 to vector<8x128xf32>
    %230 = arith.mulf %228, %229 : vector<8x128xf32>
    %cst_136 = arith.constant 5.000000e-01 : f32
    %231 = vector.broadcast %cst_136 : f32 to vector<8x128xf32>
    %232 = arith.mulf %227, %231 : vector<8x128xf32>
    %233 = arith.addf %230, %232 : vector<8x128xf32>
    %cst_137 = arith.constant 0.000000e+00 : f32
    %234 = vector.broadcast %cst_137 : f32 to vector<8x128xf32>
    %235 = arith.addf %233, %234 : vector<8x128xf32>
    %cst_138 = arith.constant 1.000000e-01 : f32
    %236 = vector.broadcast %cst_138 : f32 to vector<8x128xf32>
    %237 = arith.cmpf oge, %235, %236 : vector<8x128xf32>
    %238 = arith.extui %237 : vector<8x128xi1> to vector<8x128xi32>
    %239 = arith.sitofp %238 : vector<8x128xi32> to vector<8x128xf32>
    %cst_139 = arith.constant 0.000000e+00 : f32
    %240 = vector.broadcast %cst_139 : f32 to vector<8x128xf32>
    %241 = arith.select %237, %240, %235 : vector<8x128xi1>, vector<8x128xf32>
    %c0_140 = arith.constant 0 : index
    %c0_141 = arith.constant 0 : index
    %242 = vector.load %arg8[%c0_140, %c0_141] : memref<8x128xf32, #tpu.memory_space<vmem>>, vector<8x128xf32>
    tpu.vector_store %arg8[%c0_140, %c0_141], %241 {strides = array<i32>} : memref<8x128xf32, #tpu.memory_space<vmem>>, vector<8x128xf32>,
    %243 = vector.extract_strided_slice %239 {offsets = [0, 0], sizes = [8, 32], strides = [1, 1]} : vector<8x128xf32> to vector<8x32xf32>
    %244 = vector.extract_strided_slice %239 {offsets = [0, 32], sizes = [8, 32], strides = [1, 1]} : vector<8x128xf32> to vector<8x32xf32>
    %245 = vector.extract_strided_slice %239 {offsets = [0, 64], sizes = [8, 32], strides = [1, 1]} : vector<8x128xf32> to vector<8x32xf32>
    %246 = vector.extract_strided_slice %239 {offsets = [0, 96], sizes = [8, 32], strides = [1, 1]} : vector<8x128xf32> to vector<8x32xf32>
    %247 = arith.mulf %245, %221 : vector<8x32xf32>
    %248 = arith.mulf %243, %246 : vector<8x32xf32>
    %249 = arith.addf %247, %248 : vector<8x32xf32>
    %c0_142 = arith.constant 0 : index
    %c0_143 = arith.constant 0 : index
    %250 = vector.load %arg9[%c0_142, %c0_143] : memref<8x32xf32, #tpu.memory_space<vmem>>, vector<8x32xf32>
    %cst_144 = arith.constant 5.000000e-01 : f32
    %251 = vector.broadcast %cst_144 : f32 to vector<8x32xf32>
    %252 = arith.mulf %250, %251 : vector<8x32xf32>
    %cst_145 = arith.constant 5.000000e-01 : f32
    %253 = vector.broadcast %cst_145 : f32 to vector<8x32xf32>
    %254 = arith.mulf %249, %253 : vector<8x32xf32>
    %255 = arith.addf %252, %254 : vector<8x32xf32>
    %cst_146 = arith.constant 0.000000e+00 : f32
    %256 = vector.broadcast %cst_146 : f32 to vector<8x32xf32>
    %257 = arith.addf %255, %256 : vector<8x32xf32>
    %cst_147 = arith.constant 1.000000e-01 : f32
    %258 = vector.broadcast %cst_147 : f32 to vector<8x32xf32>
    %259 = arith.cmpf oge, %257, %258 : vector<8x32xf32>
    %260 = arith.extui %259 : vector<8x32xi1> to vector<8x32xi32>
    %261 = arith.sitofp %260 : vector<8x32xi32> to vector<8x32xf32>
    %cst_148 = arith.constant 0.000000e+00 : f32
    %262 = vector.broadcast %cst_148 : f32 to vector<8x32xf32>
    %263 = arith.select %259, %262, %257 : vector<8x32xi1>, vector<8x32xf32>
    %c0_149 = arith.constant 0 : index
    %c0_150 = arith.constant 0 : index
    %264 = vector.load %arg9[%c0_149, %c0_150] : memref<8x32xf32, #tpu.memory_space<vmem>>, vector<8x32xf32>
    tpu.vector_store %arg9[%c0_149, %c0_150], %263 {strides = array<i32>} : memref<8x32xf32, #tpu.memory_space<vmem>>, vector<8x32xf32>,
    %265 = arith.mulf %244, %261 : vector<8x32xf32>
    %266 = arith.truncf %265 : vector<8x32xf32> to vector<8x32xbf16>
    %c0_151 = arith.constant 0 : index
    %c0_152 = arith.constant 0 : index
    %267 = vector.load %arg6[%c0_151, %c0_152] : memref<8x32xbf16, #tpu.memory_space<vmem>>, vector<8x32xbf16>
    tpu.vector_store %arg6[%c0_151, %c0_152], %266 {strides = array<i32>} : memref<8x32xbf16, #tpu.memory_space<vmem>>, vector<8x32xbf16>,
    %c0_153 = arith.constant 0 : index
    %c0_154 = arith.constant 0 : index
    %268 = vector.load %arg7[%c0_153, %c0_154] : memref<8x32xf32, #tpu.memory_space<vmem>>, vector<8x32xf32>
    tpu.vector_store %arg7[%c0_153, %c0_154], %249 {strides = array<i32>} : memref<8x32xf32, #tpu.memory_space<vmem>>, vector<8x32xf32>,
    %269 = arith.truncf %265 : vector<8x32xf32> to vector<8x32xbf16>
    %270 = arith.index_cast %c4_i32 : i32 to index
    %c0_155 = arith.constant 0 : index
    %c0_156 = arith.constant 0 : index
    %271 = vector.load %arg4[%270, %c0_155, %c0_156] : memref<8x8x32xbf16, #tpu.memory_space<vmem>>, vector<1x8x32xbf16>
    %272 = vector.shape_cast %271 : vector<1x8x32xbf16> to vector<8x32xbf16>
    %273 = vector.shape_cast %269 : vector<8x32xbf16> to vector<1x8x32xbf16>
    tpu.vector_store %arg4[%270, %c0_155, %c0_156], %273 {strides = array<i32>} : memref<8x8x32xbf16, #tpu.memory_space<vmem>>, vector<1x8x32xbf16>,
    %c5_i32 = arith.constant 5 : i32
    %c0_157 = arith.constant 0 : index
    %c0_158 = arith.constant 0 : index
    %274 = vector.load %arg6[%c0_157, %c0_158] : memref<8x32xbf16, #tpu.memory_space<vmem>>, vector<8x32xbf16>
    %c0_159 = arith.constant 0 : index
    %c0_160 = arith.constant 0 : index
    %275 = vector.load %arg7[%c0_159, %c0_160] : memref<8x32xf32, #tpu.memory_space<vmem>>, vector<8x32xf32>
    %276 = arith.index_cast %c5_i32 : i32 to index
    %c0_161 = arith.constant 0 : index
    %c0_162 = arith.constant 0 : index
    %277 = vector.load %arg2[%276, %c0_161, %c0_162] : memref<8x8x128xbf16, #tpu.memory_space<vmem>>, vector<1x8x128xbf16>
    %278 = vector.shape_cast %277 : vector<1x8x128xbf16> to vector<8x128xbf16>
    %279 = arith.extf %278 : vector<8x128xbf16> to vector<8x128xf32>
    %cst_163 = arith.constant dense<0.000000e+00> : vector<8x128xf32>
    %280 = tpu.matmul %274, %3, %cst_163 {dimension_numbers = #tpu.dot_dimension_numbers<[1], [0], [0], [1], [0, 0, 1, 1], [], []>} : vector<8x32xbf16>, vector<32x128xbf16>, vector<8x128xf32> -> vector<8x128xf32>
    %281 = arith.addf %279, %280 : vector<8x128xf32>
    %c0_164 = arith.constant 0 : index
    %c0_165 = arith.constant 0 : index
    %282 = vector.load %arg8[%c0_164, %c0_165] : memref<8x128xf32, #tpu.memory_space<vmem>>, vector<8x128xf32>
    %cst_166 = arith.constant 5.000000e-01 : f32
    %283 = vector.broadcast %cst_166 : f32 to vector<8x128xf32>
    %284 = arith.mulf %282, %283 : vector<8x128xf32>
    %cst_167 = arith.constant 5.000000e-01 : f32
    %285 = vector.broadcast %cst_167 : f32 to vector<8x128xf32>
    %286 = arith.mulf %281, %285 : vector<8x128xf32>
    %287 = arith.addf %284, %286 : vector<8x128xf32>
    %cst_168 = arith.constant 0.000000e+00 : f32
    %288 = vector.broadcast %cst_168 : f32 to vector<8x128xf32>
    %289 = arith.addf %287, %288 : vector<8x128xf32>
    %cst_169 = arith.constant 1.000000e-01 : f32
    %290 = vector.broadcast %cst_169 : f32 to vector<8x128xf32>
    %291 = arith.cmpf oge, %289, %290 : vector<8x128xf32>
    %292 = arith.extui %291 : vector<8x128xi1> to vector<8x128xi32>
    %293 = arith.sitofp %292 : vector<8x128xi32> to vector<8x128xf32>
    %cst_170 = arith.constant 0.000000e+00 : f32
    %294 = vector.broadcast %cst_170 : f32 to vector<8x128xf32>
    %295 = arith.select %291, %294, %289 : vector<8x128xi1>, vector<8x128xf32>
    %c0_171 = arith.constant 0 : index
    %c0_172 = arith.constant 0 : index
    %296 = vector.load %arg8[%c0_171, %c0_172] : memref<8x128xf32, #tpu.memory_space<vmem>>, vector<8x128xf32>
    tpu.vector_store %arg8[%c0_171, %c0_172], %295 {strides = array<i32>} : memref<8x128xf32, #tpu.memory_space<vmem>>, vector<8x128xf32>,
    %297 = vector.extract_strided_slice %293 {offsets = [0, 0], sizes = [8, 32], strides = [1, 1]} : vector<8x128xf32> to vector<8x32xf32>
    %298 = vector.extract_strided_slice %293 {offsets = [0, 32], sizes = [8, 32], strides = [1, 1]} : vector<8x128xf32> to vector<8x32xf32>
    %299 = vector.extract_strided_slice %293 {offsets = [0, 64], sizes = [8, 32], strides = [1, 1]} : vector<8x128xf32> to vector<8x32xf32>
    %300 = vector.extract_strided_slice %293 {offsets = [0, 96], sizes = [8, 32], strides = [1, 1]} : vector<8x128xf32> to vector<8x32xf32>
    %301 = arith.mulf %299, %275 : vector<8x32xf32>
    %302 = arith.mulf %297, %300 : vector<8x32xf32>
    %303 = arith.addf %301, %302 : vector<8x32xf32>
    %c0_173 = arith.constant 0 : index
    %c0_174 = arith.constant 0 : index
    %304 = vector.load %arg9[%c0_173, %c0_174] : memref<8x32xf32, #tpu.memory_space<vmem>>, vector<8x32xf32>
    %cst_175 = arith.constant 5.000000e-01 : f32
    %305 = vector.broadcast %cst_175 : f32 to vector<8x32xf32>
    %306 = arith.mulf %304, %305 : vector<8x32xf32>
    %cst_176 = arith.constant 5.000000e-01 : f32
    %307 = vector.broadcast %cst_176 : f32 to vector<8x32xf32>
    %308 = arith.mulf %303, %307 : vector<8x32xf32>
    %309 = arith.addf %306, %308 : vector<8x32xf32>
    %cst_177 = arith.constant 0.000000e+00 : f32
    %310 = vector.broadcast %cst_177 : f32 to vector<8x32xf32>
    %311 = arith.addf %309, %310 : vector<8x32xf32>
    %cst_178 = arith.constant 1.000000e-01 : f32
    %312 = vector.broadcast %cst_178 : f32 to vector<8x32xf32>
    %313 = arith.cmpf oge, %311, %312 : vector<8x32xf32>
    %314 = arith.extui %313 : vector<8x32xi1> to vector<8x32xi32>
    %315 = arith.sitofp %314 : vector<8x32xi32> to vector<8x32xf32>
    %cst_179 = arith.constant 0.000000e+00 : f32
    %316 = vector.broadcast %cst_179 : f32 to vector<8x32xf32>
    %317 = arith.select %313, %316, %311 : vector<8x32xi1>, vector<8x32xf32>
    %c0_180 = arith.constant 0 : index
    %c0_181 = arith.constant 0 : index
    %318 = vector.load %arg9[%c0_180, %c0_181] : memref<8x32xf32, #tpu.memory_space<vmem>>, vector<8x32xf32>
    tpu.vector_store %arg9[%c0_180, %c0_181], %317 {strides = array<i32>} : memref<8x32xf32, #tpu.memory_space<vmem>>, vector<8x32xf32>,
    %319 = arith.mulf %298, %315 : vector<8x32xf32>
    %320 = arith.truncf %319 : vector<8x32xf32> to vector<8x32xbf16>
    %c0_182 = arith.constant 0 : index
    %c0_183 = arith.constant 0 : index
    %321 = vector.load %arg6[%c0_182, %c0_183] : memref<8x32xbf16, #tpu.memory_space<vmem>>, vector<8x32xbf16>
    tpu.vector_store %arg6[%c0_182, %c0_183], %320 {strides = array<i32>} : memref<8x32xbf16, #tpu.memory_space<vmem>>, vector<8x32xbf16>,
    %c0_184 = arith.constant 0 : index
    %c0_185 = arith.constant 0 : index
    %322 = vector.load %arg7[%c0_184, %c0_185] : memref<8x32xf32, #tpu.memory_space<vmem>>, vector<8x32xf32>
    tpu.vector_store %arg7[%c0_184, %c0_185], %303 {strides = array<i32>} : memref<8x32xf32, #tpu.memory_space<vmem>>, vector<8x32xf32>,
    %323 = arith.truncf %319 : vector<8x32xf32> to vector<8x32xbf16>
    %324 = arith.index_cast %c5_i32 : i32 to index
    %c0_186 = arith.constant 0 : index
    %c0_187 = arith.constant 0 : index
    %325 = vector.load %arg4[%324, %c0_186, %c0_187] : memref<8x8x32xbf16, #tpu.memory_space<vmem>>, vector<1x8x32xbf16>
    %326 = vector.shape_cast %325 : vector<1x8x32xbf16> to vector<8x32xbf16>
    %327 = vector.shape_cast %323 : vector<8x32xbf16> to vector<1x8x32xbf16>
    tpu.vector_store %arg4[%324, %c0_186, %c0_187], %327 {strides = array<i32>} : memref<8x8x32xbf16, #tpu.memory_space<vmem>>, vector<1x8x32xbf16>,
    %c6_i32 = arith.constant 6 : i32
    %c0_188 = arith.constant 0 : index
    %c0_189 = arith.constant 0 : index
    %328 = vector.load %arg6[%c0_188, %c0_189] : memref<8x32xbf16, #tpu.memory_space<vmem>>, vector<8x32xbf16>
    %c0_190 = arith.constant 0 : index
    %c0_191 = arith.constant 0 : index
    %329 = vector.load %arg7[%c0_190, %c0_191] : memref<8x32xf32, #tpu.memory_space<vmem>>, vector<8x32xf32>
    %330 = arith.index_cast %c6_i32 : i32 to index
    %c0_192 = arith.constant 0 : index
    %c0_193 = arith.constant 0 : index
    %331 = vector.load %arg2[%330, %c0_192, %c0_193] : memref<8x8x128xbf16, #tpu.memory_space<vmem>>, vector<1x8x128xbf16>
    %332 = vector.shape_cast %331 : vector<1x8x128xbf16> to vector<8x128xbf16>
    %333 = arith.extf %332 : vector<8x128xbf16> to vector<8x128xf32>
    %cst_194 = arith.constant dense<0.000000e+00> : vector<8x128xf32>
    %334 = tpu.matmul %328, %3, %cst_194 {dimension_numbers = #tpu.dot_dimension_numbers<[1], [0], [0], [1], [0, 0, 1, 1], [], []>} : vector<8x32xbf16>, vector<32x128xbf16>, vector<8x128xf32> -> vector<8x128xf32>
    %335 = arith.addf %333, %334 : vector<8x128xf32>
    %c0_195 = arith.constant 0 : index
    %c0_196 = arith.constant 0 : index
    %336 = vector.load %arg8[%c0_195, %c0_196] : memref<8x128xf32, #tpu.memory_space<vmem>>, vector<8x128xf32>
    %cst_197 = arith.constant 5.000000e-01 : f32
    %337 = vector.broadcast %cst_197 : f32 to vector<8x128xf32>
    %338 = arith.mulf %336, %337 : vector<8x128xf32>
    %cst_198 = arith.constant 5.000000e-01 : f32
    %339 = vector.broadcast %cst_198 : f32 to vector<8x128xf32>
    %340 = arith.mulf %335, %339 : vector<8x128xf32>
    %341 = arith.addf %338, %340 : vector<8x128xf32>
    %cst_199 = arith.constant 0.000000e+00 : f32
    %342 = vector.broadcast %cst_199 : f32 to vector<8x128xf32>
    %343 = arith.addf %341, %342 : vector<8x128xf32>
    %cst_200 = arith.constant 1.000000e-01 : f32
    %344 = vector.broadcast %cst_200 : f32 to vector<8x128xf32>
    %345 = arith.cmpf oge, %343, %344 : vector<8x128xf32>
    %346 = arith.extui %345 : vector<8x128xi1> to vector<8x128xi32>
    %347 = arith.sitofp %346 : vector<8x128xi32> to vector<8x128xf32>
    %cst_201 = arith.constant 0.000000e+00 : f32
    %348 = vector.broadcast %cst_201 : f32 to vector<8x128xf32>
    %349 = arith.select %345, %348, %343 : vector<8x128xi1>, vector<8x128xf32>
    %c0_202 = arith.constant 0 : index
    %c0_203 = arith.constant 0 : index
    %350 = vector.load %arg8[%c0_202, %c0_203] : memref<8x128xf32, #tpu.memory_space<vmem>>, vector<8x128xf32>
    tpu.vector_store %arg8[%c0_202, %c0_203], %349 {strides = array<i32>} : memref<8x128xf32, #tpu.memory_space<vmem>>, vector<8x128xf32>,
    %351 = vector.extract_strided_slice %347 {offsets = [0, 0], sizes = [8, 32], strides = [1, 1]} : vector<8x128xf32> to vector<8x32xf32>
    %352 = vector.extract_strided_slice %347 {offsets = [0, 32], sizes = [8, 32], strides = [1, 1]} : vector<8x128xf32> to vector<8x32xf32>
    %353 = vector.extract_strided_slice %347 {offsets = [0, 64], sizes = [8, 32], strides = [1, 1]} : vector<8x128xf32> to vector<8x32xf32>
    %354 = vector.extract_strided_slice %347 {offsets = [0, 96], sizes = [8, 32], strides = [1, 1]} : vector<8x128xf32> to vector<8x32xf32>
    %355 = arith.mulf %353, %329 : vector<8x32xf32>
    %356 = arith.mulf %351, %354 : vector<8x32xf32>
    %357 = arith.addf %355, %356 : vector<8x32xf32>
    %c0_204 = arith.constant 0 : index
    %c0_205 = arith.constant 0 : index
    %358 = vector.load %arg9[%c0_204, %c0_205] : memref<8x32xf32, #tpu.memory_space<vmem>>, vector<8x32xf32>
    %cst_206 = arith.constant 5.000000e-01 : f32
    %359 = vector.broadcast %cst_206 : f32 to vector<8x32xf32>
    %360 = arith.mulf %358, %359 : vector<8x32xf32>
    %cst_207 = arith.constant 5.000000e-01 : f32
    %361 = vector.broadcast %cst_207 : f32 to vector<8x32xf32>
    %362 = arith.mulf %357, %361 : vector<8x32xf32>
    %363 = arith.addf %360, %362 : vector<8x32xf32>
    %cst_208 = arith.constant 0.000000e+00 : f32
    %364 = vector.broadcast %cst_208 : f32 to vector<8x32xf32>
    %365 = arith.addf %363, %364 : vector<8x32xf32>
    %cst_209 = arith.constant 1.000000e-01 : f32
    %366 = vector.broadcast %cst_209 : f32 to vector<8x32xf32>
    %367 = arith.cmpf oge, %365, %366 : vector<8x32xf32>
    %368 = arith.extui %367 : vector<8x32xi1> to vector<8x32xi32>
    %369 = arith.sitofp %368 : vector<8x32xi32> to vector<8x32xf32>
    %cst_210 = arith.constant 0.000000e+00 : f32
    %370 = vector.broadcast %cst_210 : f32 to vector<8x32xf32>
    %371 = arith.select %367, %370, %365 : vector<8x32xi1>, vector<8x32xf32>
    %c0_211 = arith.constant 0 : index
    %c0_212 = arith.constant 0 : index
    %372 = vector.load %arg9[%c0_211, %c0_212] : memref<8x32xf32, #tpu.memory_space<vmem>>, vector<8x32xf32>
    tpu.vector_store %arg9[%c0_211, %c0_212], %371 {strides = array<i32>} : memref<8x32xf32, #tpu.memory_space<vmem>>, vector<8x32xf32>,
    %373 = arith.mulf %352, %369 : vector<8x32xf32>
    %374 = arith.truncf %373 : vector<8x32xf32> to vector<8x32xbf16>
    %c0_213 = arith.constant 0 : index
    %c0_214 = arith.constant 0 : index
    %375 = vector.load %arg6[%c0_213, %c0_214] : memref<8x32xbf16, #tpu.memory_space<vmem>>, vector<8x32xbf16>
    tpu.vector_store %arg6[%c0_213, %c0_214], %374 {strides = array<i32>} : memref<8x32xbf16, #tpu.memory_space<vmem>>, vector<8x32xbf16>,
    %c0_215 = arith.constant 0 : index
    %c0_216 = arith.constant 0 : index
    %376 = vector.load %arg7[%c0_215, %c0_216] : memref<8x32xf32, #tpu.memory_space<vmem>>, vector<8x32xf32>
    tpu.vector_store %arg7[%c0_215, %c0_216], %357 {strides = array<i32>} : memref<8x32xf32, #tpu.memory_space<vmem>>, vector<8x32xf32>,
    %377 = arith.truncf %373 : vector<8x32xf32> to vector<8x32xbf16>
    %378 = arith.index_cast %c6_i32 : i32 to index
    %c0_217 = arith.constant 0 : index
    %c0_218 = arith.constant 0 : index
    %379 = vector.load %arg4[%378, %c0_217, %c0_218] : memref<8x8x32xbf16, #tpu.memory_space<vmem>>, vector<1x8x32xbf16>
    %380 = vector.shape_cast %379 : vector<1x8x32xbf16> to vector<8x32xbf16>
    %381 = vector.shape_cast %377 : vector<8x32xbf16> to vector<1x8x32xbf16>
    tpu.vector_store %arg4[%378, %c0_217, %c0_218], %381 {strides = array<i32>} : memref<8x8x32xbf16, #tpu.memory_space<vmem>>, vector<1x8x32xbf16>,
    %c7_i32 = arith.constant 7 : i32
    %c0_219 = arith.constant 0 : index
    %c0_220 = arith.constant 0 : index
    %382 = vector.load %arg6[%c0_219, %c0_220] : memref<8x32xbf16, #tpu.memory_space<vmem>>, vector<8x32xbf16>
    %c0_221 = arith.constant 0 : index
    %c0_222 = arith.constant 0 : index
    %383 = vector.load %arg7[%c0_221, %c0_222] : memref<8x32xf32, #tpu.memory_space<vmem>>, vector<8x32xf32>
    %384 = arith.index_cast %c7_i32 : i32 to index
    %c0_223 = arith.constant 0 : index
    %c0_224 = arith.constant 0 : index
    %385 = vector.load %arg2[%384, %c0_223, %c0_224] : memref<8x8x128xbf16, #tpu.memory_space<vmem>>, vector<1x8x128xbf16>
    %386 = vector.shape_cast %385 : vector<1x8x128xbf16> to vector<8x128xbf16>
    %387 = arith.extf %386 : vector<8x128xbf16> to vector<8x128xf32>
    %cst_225 = arith.constant dense<0.000000e+00> : vector<8x128xf32>
    %388 = tpu.matmul %382, %3, %cst_225 {dimension_numbers = #tpu.dot_dimension_numbers<[1], [0], [0], [1], [0, 0, 1, 1], [], []>} : vector<8x32xbf16>, vector<32x128xbf16>, vector<8x128xf32> -> vector<8x128xf32>
    %389 = arith.addf %387, %388 : vector<8x128xf32>
    %c0_226 = arith.constant 0 : index
    %c0_227 = arith.constant 0 : index
    %390 = vector.load %arg8[%c0_226, %c0_227] : memref<8x128xf32, #tpu.memory_space<vmem>>, vector<8x128xf32>
    %cst_228 = arith.constant 5.000000e-01 : f32
    %391 = vector.broadcast %cst_228 : f32 to vector<8x128xf32>
    %392 = arith.mulf %390, %391 : vector<8x128xf32>
    %cst_229 = arith.constant 5.000000e-01 : f32
    %393 = vector.broadcast %cst_229 : f32 to vector<8x128xf32>
    %394 = arith.mulf %389, %393 : vector<8x128xf32>
    %395 = arith.addf %392, %394 : vector<8x128xf32>
    %cst_230 = arith.constant 0.000000e+00 : f32
    %396 = vector.broadcast %cst_230 : f32 to vector<8x128xf32>
    %397 = arith.addf %395, %396 : vector<8x128xf32>
    %cst_231 = arith.constant 1.000000e-01 : f32
    %398 = vector.broadcast %cst_231 : f32 to vector<8x128xf32>
    %399 = arith.cmpf oge, %397, %398 : vector<8x128xf32>
    %400 = arith.extui %399 : vector<8x128xi1> to vector<8x128xi32>
    %401 = arith.sitofp %400 : vector<8x128xi32> to vector<8x128xf32>
    %cst_232 = arith.constant 0.000000e+00 : f32
    %402 = vector.broadcast %cst_232 : f32 to vector<8x128xf32>
    %403 = arith.select %399, %402, %397 : vector<8x128xi1>, vector<8x128xf32>
    %c0_233 = arith.constant 0 : index
    %c0_234 = arith.constant 0 : index
    %404 = vector.load %arg8[%c0_233, %c0_234] : memref<8x128xf32, #tpu.memory_space<vmem>>, vector<8x128xf32>
    tpu.vector_store %arg8[%c0_233, %c0_234], %403 {strides = array<i32>} : memref<8x128xf32, #tpu.memory_space<vmem>>, vector<8x128xf32>,
    %405 = vector.extract_strided_slice %401 {offsets = [0, 0], sizes = [8, 32], strides = [1, 1]} : vector<8x128xf32> to vector<8x32xf32>
    %406 = vector.extract_strided_slice %401 {offsets = [0, 32], sizes = [8, 32], strides = [1, 1]} : vector<8x128xf32> to vector<8x32xf32>
    %407 = vector.extract_strided_slice %401 {offsets = [0, 64], sizes = [8, 32], strides = [1, 1]} : vector<8x128xf32> to vector<8x32xf32>
    %408 = vector.extract_strided_slice %401 {offsets = [0, 96], sizes = [8, 32], strides = [1, 1]} : vector<8x128xf32> to vector<8x32xf32>
    %409 = arith.mulf %407, %383 : vector<8x32xf32>
    %410 = arith.mulf %405, %408 : vector<8x32xf32>
    %411 = arith.addf %409, %410 : vector<8x32xf32>
    %c0_235 = arith.constant 0 : index
    %c0_236 = arith.constant 0 : index
    %412 = vector.load %arg9[%c0_235, %c0_236] : memref<8x32xf32, #tpu.memory_space<vmem>>, vector<8x32xf32>
    %cst_237 = arith.constant 5.000000e-01 : f32
    %413 = vector.broadcast %cst_237 : f32 to vector<8x32xf32>
    %414 = arith.mulf %412, %413 : vector<8x32xf32>
    %cst_238 = arith.constant 5.000000e-01 : f32
    %415 = vector.broadcast %cst_238 : f32 to vector<8x32xf32>
    %416 = arith.mulf %411, %415 : vector<8x32xf32>
    %417 = arith.addf %414, %416 : vector<8x32xf32>
    %cst_239 = arith.constant 0.000000e+00 : f32
    %418 = vector.broadcast %cst_239 : f32 to vector<8x32xf32>
    %419 = arith.addf %417, %418 : vector<8x32xf32>
    %cst_240 = arith.constant 1.000000e-01 : f32
    %420 = vector.broadcast %cst_240 : f32 to vector<8x32xf32>
    %421 = arith.cmpf oge, %419, %420 : vector<8x32xf32>
    %422 = arith.extui %421 : vector<8x32xi1> to vector<8x32xi32>
    %423 = arith.sitofp %422 : vector<8x32xi32> to vector<8x32xf32>
    %cst_241 = arith.constant 0.000000e+00 : f32
    %424 = vector.broadcast %cst_241 : f32 to vector<8x32xf32>
    %425 = arith.select %421, %424, %419 : vector<8x32xi1>, vector<8x32xf32>
    %c0_242 = arith.constant 0 : index
    %c0_243 = arith.constant 0 : index
    %426 = vector.load %arg9[%c0_242, %c0_243] : memref<8x32xf32, #tpu.memory_space<vmem>>, vector<8x32xf32>
    tpu.vector_store %arg9[%c0_242, %c0_243], %425 {strides = array<i32>} : memref<8x32xf32, #tpu.memory_space<vmem>>, vector<8x32xf32>,
    %427 = arith.mulf %406, %423 : vector<8x32xf32>
    %428 = arith.truncf %427 : vector<8x32xf32> to vector<8x32xbf16>
    %c0_244 = arith.constant 0 : index
    %c0_245 = arith.constant 0 : index
    %429 = vector.load %arg6[%c0_244, %c0_245] : memref<8x32xbf16, #tpu.memory_space<vmem>>, vector<8x32xbf16>
    tpu.vector_store %arg6[%c0_244, %c0_245], %428 {strides = array<i32>} : memref<8x32xbf16, #tpu.memory_space<vmem>>, vector<8x32xbf16>,
    %c0_246 = arith.constant 0 : index
    %c0_247 = arith.constant 0 : index
    %430 = vector.load %arg7[%c0_246, %c0_247] : memref<8x32xf32, #tpu.memory_space<vmem>>, vector<8x32xf32>
    tpu.vector_store %arg7[%c0_246, %c0_247], %411 {strides = array<i32>} : memref<8x32xf32, #tpu.memory_space<vmem>>, vector<8x32xf32>,
    %431 = arith.truncf %427 : vector<8x32xf32> to vector<8x32xbf16>
    %432 = arith.index_cast %c7_i32 : i32 to index
    %c0_248 = arith.constant 0 : index
    %c0_249 = arith.constant 0 : index
    %433 = vector.load %arg4[%432, %c0_248, %c0_249] : memref<8x8x32xbf16, #tpu.memory_space<vmem>>, vector<1x8x32xbf16>
    %434 = vector.shape_cast %433 : vector<1x8x32xbf16> to vector<8x32xbf16>
    %435 = vector.shape_cast %431 : vector<8x32xbf16> to vector<1x8x32xbf16>
    tpu.vector_store %arg4[%432, %c0_248, %c0_249], %435 {strides = array<i32>} : memref<8x8x32xbf16, #tpu.memory_space<vmem>>, vector<1x8x32xbf16>,
    %c8_i32 = arith.constant 8 : i32
    %c0_i32_250 = arith.constant 0 : i32
    %436 = arith.cmpi eq, %arg1, %c0_i32_250 : i32
    %437 = arith.extui %436 : i1 to i32
    %c0_i32_251 = arith.constant 0 : i32
    %438 = arith.cmpi ne, %437, %c0_i32_251 : i32
    scf.if %438 {
      %c0_252 = arith.constant 0 : index
      %c0_253 = arith.constant 0 : index
      %439 = vector.load %arg7[%c0_252, %c0_253] : memref<8x32xf32, #tpu.memory_space<vmem>>, vector<8x32xf32>
      %c0_254 = arith.constant 0 : index
      %c0_255 = arith.constant 0 : index
      %440 = vector.load %arg5[%c0_254, %c0_255] : memref<8x32xf32, #tpu.memory_space<vmem>>, vector<8x32xf32>
      tpu.vector_store %arg5[%c0_254, %c0_255], %439 {strides = array<i32>} : memref<8x32xf32, #tpu.memory_space<vmem>>, vector<8x32xf32>,
    } else {
    }
    return
  }
  func.func @transform_0(%arg0: i32, %arg1: i32) -> (i32, i32, i32) {
    %c0_i32 = arith.constant 0 : i32
    %c0_i32_0 = arith.constant 0 : i32
    return %arg1, %arg0, %c0_i32 : i32, i32, i32
  }
  func.func @transform_1(%arg0: i32, %arg1: i32) -> (i32, i32) {
    %c0_i32 = arith.constant 0 : i32
    %c0_i32_0 = arith.constant 0 : i32
    %c0_i32_1 = arith.constant 0 : i32
    return %c0_i32, %c0_i32_0 : i32, i32
  }
  func.func @transform_2(%arg0: i32, %arg1: i32) -> (i32, i32, i32) {
    %c0_i32 = arith.constant 0 : i32
    %c0_i32_0 = arith.constant 0 : i32
    return %arg1, %arg0, %c0_i32 : i32, i32, i32
  }
  func.func @transform_3(%arg0: i32, %arg1: i32) -> (i32, i32) {
    %c0_i32 = arith.constant 0 : i32
    %c0_i32_0 = arith.constant 0 : i32
    return %arg0, %c0_i32 : i32, i32
  }
}

</mosaic_0001>

<llo_original>
// kernel: tpu_custom_call.1
$region0: #{tpu_custom_call.1}
  #allocation0 [shape = 'u32[]', space=smem, size = 0x4, offset = 0x4, fixed_abs, tag = 'smem constant byte address 0x4 - core index']
  #allocation1 [shape = 'u32[144,128]{1,0:T(1,128)}', space=vmem, size = 0x12000, scoped, tag = 'internal scratch']
  #allocation2 [shape = 'bf16[8,32]{1,0:T(8,128)(2,1)}', space=vmem, size = 0x800, scoped, tag = 'scratch operand']
  #allocation3 [shape = 'f32[8,32]{1,0:T(8,128)}', space=vmem, size = 0x1000, scoped, tag = 'scratch operand']
  #allocation4 [shape = 'f32[8,128]{1,0:T(8,128)}', space=vmem, size = 0x1000, scoped, tag = 'scratch operand']
  #allocation5 [shape = 'f32[8,32]{1,0:T(8,128)}', space=vmem, size = 0x1000, scoped, tag = 'scratch operand']
  %s0 = inlined_call_operand.hbm [shape: bf16[8,8,128], index: 0, kind: input, shape index: {}]
  %s1 = inlined_call_operand.hbm [shape: bf16[32,128], index: 1, kind: input, shape index: {}]
  %s2 = inlined_call_operand.hbm [shape: bf16[8,8,32], index: 2, kind: output, shape index: {0}]
  %s3 = inlined_call_operand.hbm [shape: f32[8,32], index: 3, kind: output, shape index: {1}]
  %4 = xla_tuple %s2, %s3
  %s5 = sld [smem:[#allocation0]]
  $region42: #{tpu_custom_call.1} parent=0
    _
  %s7 = ssub.s32 1, %s5
  %s8 = scalar_select 0, %s7, %s5
  $region1: #{tpu_custom_call.1} parent=0
    #allocation6 [shape = 'u8[16384]{0}', space=vmem, size = 0x4000, scoped, tag = 'input window, operand 0, single buffered']
    #allocation7 [shape = 's32[1]{0}', space=sflag, size = 0x4, scoped, tag = 'scoped memory for tpu_custom_call.1']
    #allocation8 [shape = 's32[1]{0}', space=sflag, size = 0x4, scoped, tag = 'scoped memory for tpu_custom_call.1']
    #allocation9 [shape = 'u8[8192]{0}', space=vmem, size = 0x2000, scoped, tag = 'input window, operand 1, single buffered']
    #allocation10 [shape = 's32[1]{0}', space=sflag, size = 0x4, scoped, tag = 'scoped memory for tpu_custom_call.1']
    #allocation11 [shape = 'u8[16384]{0}', space=vmem, size = 0x4000, scoped, tag = 'output window, operand 0, single buffered']
    #allocation12 [shape = 'u8[4096]{0}', space=vmem, size = 0x1000, scoped, tag = 'output window, operand 1, single buffered']
    #allocation13 [shape = 's32[1]{0}', space=sflag, size = 0x4, scoped, tag = 'scoped memory for tpu_custom_call.1']
    %9 = vsyncpa [#allocation7], 0
    %10 = vsyncpa [#allocation10], 0
    %11 = vsyncpa [#allocation8], 0
    %12 = vsyncpa [#allocation13], 0
    // Predicated region
    $region2: #{tpu_custom_call.1} parent=1 // pred_check
      _
    $region3: #{tpu_custom_call.1} parent=1 // pred_check_branch
      %14 = sbr.rel (0) target = $region5
    $region4: #{tpu_custom_call.1} parent=1 // pred_region
      %s16 = ssub.s32 512, 512
      %17 = vsyncadd [#allocation7], %s16
      %s18 = sshll.u32 [#allocation6], 4
      %s19 = int_to_ptr.vmem [resolvable:$true] %s18
      %24 = dma.hbm_to_vmem [thread:$0]  %s0, 512, %s19, [#allocation7], 64, 64, 4
    $region5: #{tpu_custom_call.1} parent=1 // pred_fallthru
      _
    // Predicated region
    $region6: #{tpu_custom_call.1} parent=1 // pred_check
      _
    $region7: #{tpu_custom_call.1} parent=1 // pred_check_branch
      %26 = sbr.rel (0) target = $region9
    $region8: #{tpu_custom_call.1} parent=1 // pred_region
      %s28 = ssub.s32 256, 256
      %29 = vsyncadd [#allocation10], %s28
      %s30 = sshll.u32 [#allocation9], 4
      %s31 = int_to_ptr.vmem [resolvable:$true] %s30
      %36 = dma.hbm_to_vmem [thread:$0]  %s1, 256, %s31, [#allocation10], 64, 64, 4
    $region9: #{tpu_custom_call.1} parent=1 // pred_fallthru
      _
    // Predicated region
    $region10: #{tpu_custom_call.1} parent=1 // pred_check
      _
    $region11: #{tpu_custom_call.1} parent=1 // pred_check_branch
      %38 = sbr.rel (0) target = $region13
    $region12: #{tpu_custom_call.1} parent=1 // pred_region
      %39 = dma.done [#allocation7], 512
    $region13: #{tpu_custom_call.1} parent=1 // pred_fallthru
      _
    // Predicated region
    $region14: #{tpu_custom_call.1} parent=1 // pred_check
      _
    $region15: #{tpu_custom_call.1} parent=1 // pred_check_branch
      %41 = sbr.rel (0) target = $region17
    $region16: #{tpu_custom_call.1} parent=1 // pred_region
      %42 = dma.done [#allocation10], 256
    $region17: #{tpu_custom_call.1} parent=1 // pred_fallthru
      _
    %p44 = scmp.eq.s32.totalorder 0, 0
    // Predicated region
    $region18: #{tpu_custom_call.1} parent=1 // pred_check
      %p45 = pneg %p44
    $region19: #{tpu_custom_call.1} parent=1 // pred_check_branch
      %47 = sbr.rel (%p45) target = $region21
    $region20: #{tpu_custom_call.1} parent=1 // pred_region
      %vm48 = vcmask 257024
      %49 = vst.msk [vmem:[#allocation2] sm:$0xf] %vm48, 0
      %vm50 = vcmask 261120
      %51 = vst.msk [vmem:[#allocation3] sm:$0xff] %vm50, 0.0
      %52 = vst [vmem:[#allocation4] sm:$0xff] 0.0
      %53 = vst.msk [vmem:[#allocation5] sm:$0xff] %vm50, 0.0
    $region21: #{tpu_custom_call.1} parent=1 // pred_fallthru
      _
    %v54 = vld [vmem:[#allocation9] sm:$0xf]
    %v55 = vld [vmem:[#allocation9 + $0x4] sm:$0xf]
    %v56 = vld [vmem:[#allocation9 + $0x8] sm:$0xf]
    %v57 = vld [vmem:[#allocation9 + $0xc] sm:$0xf]
    %v58 = vld [vmem:[#allocation2] sm:$0xf]
    %v59 = vld [vmem:[#allocation3] sm:$0xff]
    %v60 = vld [vmem:[#allocation6] sm:$0xf]
    %v61 = vunpack.c.l.bf16 %v60
    %v66 = vunpack.c.l.b16 %v54
    %v67 = vunpack.c.l.b16 %v55
    %v68 = vunpack.c.l.b16 %v56
    %v69 = vunpack.c.l.b16 %v57
    %v70 = vpack.c.b16 %v67, %v66
    %v71 = vpack.c.b16 %v69, %v68
    %vm74 = vcmask 261120
    %v76 = vsel %vm74, %v58, 0
    %78 = vmatprep.subr.bf16.mxu0 0
    %79 = vmatpush1.bf16.msra.mxu0 %v70
    %80 = vmatprep.subr.bf16.mxu0 0
    %81 = vmatpush1.bf16.msra.mxu0 %v71
    %82 = vmatprep.subr.bf16.mxu0 0
    %83 = vmatpush1.bf16.msra.mxu0 0
    %84 = vmatprep.subr.bf16.mxu0 0
    %85 = vmatpush1.bf16.msra.mxu0 0
    %86 = vmatprep.subr.bf16.mxu0 0
    %87 = vmatpush1.bf16.msra.mxu0 0
    %88 = vmatprep.subr.bf16.mxu0 0
    %89 = vmatpush1.bf16.msra.mxu0 0
    %90 = vmatprep.subr.bf16.mxu0 0
    %91 = vmatpush1.bf16.msra.mxu0 0
    %92 = vmatprep.subr.bf16.mxu0 0
    %93 = vmatpush1.bf16.msra.mxu0 0
    %94 = vmatprep.subr.bf16.mxu0 0
    %95 = vmatpush1.bf16.msra.mxu0 0
    %96 = vmatprep.subr.bf16.mxu0 0
    %97 = vmatpush1.bf16.msra.mxu0 0
    %98 = vmatprep.subr.bf16.mxu0 0
    %99 = vmatpush1.bf16.msra.mxu0 0
    %100 = vmatprep.subr.bf16.mxu0 0
    %101 = vmatpush1.bf16.msra.mxu0 0
    %102 = vmatprep.subr.bf16.mxu0 0
    %103 = vmatpush1.bf16.msra.mxu0 0
    %104 = vmatprep.subr.bf16.mxu0 0
    %105 = vmatpush1.bf16.msra.mxu0 0
    %106 = vmatprep.subr.bf16.mxu0 0
    %107 = vmatpush1.bf16.msra.mxu0 0
    %108 = vmatprep.subr.bf16.mxu0 0
    %109 = vmatpush1.bf16.msra.mxu0 0
    %110 = vmatprep.mubr.bf16.mxu0 0
    %111 = vmatmul.mubr.bf16.gmra.mrb[0].mxu0 %v76
    %v112 = vpop.f32.mrb[0].mxu0
    %v113 = vadd.f32 0.0, %v112
    %v114 = vpop.f32.mrb[0].mxu0
    %v115 = vpop.f32.mrb[0].mxu0
    %v116 = vpop.f32.mrb[0].mxu0
    %117 = vdwg.mxu0
    %v118 = vadd.f32 %v61, %v113
    %v119 = vld [vmem:[#allocation4] sm:$0xff]
    %v120 = vmul.f32 %v119, 0.5
    %v121 = vmul.f32 %v118, 0.5
    %v122 = vadd.f32 %v120, %v121
    %v123 = vadd.f32 %v122, 0.0
    %vm124 = vcmp.ge.f32.partialorder %v123, 0.1
    %v125 = vsel %vm124, 1, 0
    %v126 = vcvt.s32.f32 %v125
    %v127 = vsel %vm124, 0.0, %v123
    %128 = vst [vmem:[#allocation4] sm:$0xff] %v127
    %130 = vrot.lane.b32.xlu0 %v59, 64
    %v131 = vpop.permute.xlu0 %130
    %v133 = vmul.f32 %v126, %v131
    %135 = vrot.lane.b32.xlu0 %v126, 32
    %v136 = vpop.permute.xlu0 %135
    %v138 = vmul.f32 %v126, %v136
    %140 = vrot.lane.b32.xlu0 %v138, 64
    %v141 = vpop.permute.xlu0 %140
    %v143 = vadd.f32 %v133, %v141
    %v144 = vld [vmem:[#allocation5] sm:$0xff]
    %v145 = vmul.f32 %v144, 0.5
    %v146 = vmul.f32 %v143, 0.5
    %148 = vrot.lane.b32.xlu0 %v146, 64
    %v149 = vpop.permute.xlu0 %148
    %v151 = vadd.f32 %v145, %v149
    %v152 = vadd.f32 %v151, 0.0
    %vm153 = vcmp.ge.f32.partialorder %v152, 0.1
    %v154 = vsel %vm153, 1, 0
    %v155 = vcvt.s32.f32 %v154
    %v156 = vsel %vm153, 0.0, %v152
    %157 = vst.msk [vmem:[#allocation5] sm:$0xff] %vm74, %v156
    %159 = vrot.lane.b32.xlu0 %v155, 32
    %v160 = vpop.permute.xlu0 %159
    %v162 = vmul.f32 %v126, %v160
    %v163 = vpack.c.bf16 %v162, %v162
    %v165 = vunpack.c.l.b16 %v163
    %v166 = vpack.c.b16 %v165, %v165
    %167 = vrot.lane.b32.xlu0 %v166, 96
    %v168 = vpop.permute.xlu0 %167
    %vm170 = vcmask 257024
    %171 = vst.msk [vmem:[#allocation2] sm:$0xf] %vm170, %v168
    %173 = vrot.lane.b32.xlu0 %v143, 64
    %v174 = vpop.permute.xlu0 %173
    %176 = vst.msk [vmem:[#allocation3] sm:$0xff] %vm74, %v174
    %177 = vst.msk [vmem:[#allocation11] sm:$0xf] %vm170, %v168
    %v178 = vld [vmem:[#allocation2] sm:$0xf]
    %v179 = vld [vmem:[#allocation3] sm:$0xff]
    %s180 = scalar_lea.vmem [#allocation6], 4
    %v181 = vld [vmem:[%s180] sm:$0xf]
    %v182 = vunpack.c.l.bf16 %v181
    %v184 = vsel %vm74, %v178, 0
    %186 = vmatprep.subr.bf16.mxu0 0
    %187 = vmatpush1.bf16.msra.mxu0 %v70
    %188 = vmatprep.subr.bf16.mxu0 0
    %189 = vmatpush1.bf16.msra.mxu0 %v71
    %190 = vmatprep.subr.bf16.mxu0 0
    %191 = vmatpush1.bf16.msra.mxu0 0
    %192 = vmatprep.subr.bf16.mxu0 0
    %193 = vmatpush1.bf16.msra.mxu0 0
    %194 = vmatprep.subr.bf16.mxu0 0
    %195 = vmatpush1.bf16.msra.mxu0 0
    %196 = vmatprep.subr.bf16.mxu0 0
    %197 = vmatpush1.bf16.msra.mxu0 0
    %198 = vmatprep.subr.bf16.mxu0 0
    %199 = vmatpush1.bf16.msra.mxu0 0
    %200 = vmatprep.subr.bf16.mxu0 0
    %201 = vmatpush1.bf16.msra.mxu0 0
    %202 = vmatprep.subr.bf16.mxu0 0
    %203 = vmatpush1.bf16.msra.mxu0 0
    %204 = vmatprep.subr.bf16.mxu0 0
    %205 = vmatpush1.bf16.msra.mxu0 0
    %206 = vmatprep.subr.bf16.mxu0 0
    %207 = vmatpush1.bf16.msra.mxu0 0
    %208 = vmatprep.subr.bf16.mxu0 0
    %209 = vmatpush1.bf16.msra.mxu0 0
    %210 = vmatprep.subr.bf16.mxu0 0
    %211 = vmatpush1.bf16.msra.mxu0 0
    %212 = vmatprep.subr.bf16.mxu0 0
    %213 = vmatpush1.bf16.msra.mxu0 0
    %214 = vmatprep.subr.bf16.mxu0 0
    %215 = vmatpush1.bf16.msra.mxu0 0
    %216 = vmatprep.subr.bf16.mxu0 0
    %217 = vmatpush1.bf16.msra.mxu0 0
    %218 = vmatprep.mubr.bf16.mxu0 0
    %219 = vmatmul.mubr.bf16.gmra.mrb[0].mxu0 %v184
    %v220 = vpop.f32.mrb[0].mxu0
    %v221 = vadd.f32 0.0, %v220
    %v222 = vpop.f32.mrb[0].mxu0
    %v223 = vpop.f32.mrb[0].mxu0
    %v224 = vpop.f32.mrb[0].mxu0
    %225 = vdwg.mxu0
    %v226 = vadd.f32 %v182, %v221
    %v227 = vld [vmem:[#allocation4] sm:$0xff]
    %v228 = vmul.f32 %v227, 0.5
    %v229 = vmul.f32 %v226, 0.5
    %v230 = vadd.f32 %v228, %v229
    %v231 = vadd.f32 %v230, 0.0
    %vm232 = vcmp.ge.f32.partialorder %v231, 0.1
    %v233 = vsel %vm232, 1, 0
    %v234 = vcvt.s32.f32 %v233
    %v235 = vsel %vm232, 0.0, %v231
    %236 = vst [vmem:[#allocation4] sm:$0xff] %v235
    %238 = vrot.lane.b32.xlu0 %v179, 64
    %v239 = vpop.permute.xlu0 %238
    %v241 = vmul.f32 %v234, %v239
    %243 = vrot.lane.b32.xlu0 %v234, 32
    %v244 = vpop.permute.xlu0 %243
    %v246 = vmul.f32 %v234, %v244
    %248 = vrot.lane.b32.xlu0 %v246, 64
    %v249 = vpop.permute.xlu0 %248
    %v251 = vadd.f32 %v241, %v249
    %v252 = vld [vmem:[#allocation5] sm:$0xff]
    %v253 = vmul.f32 %v252, 0.5
    %v254 = vmul.f32 %v251, 0.5
    %256 = vrot.lane.b32.xlu0 %v254, 64
    %v257 = vpop.permute.xlu0 %256
    %v259 = vadd.f32 %v253, %v257
    %v260 = vadd.f32 %v259, 0.0
    %vm261 = vcmp.ge.f32.partialorder %v260, 0.1
    %v262 = vsel %vm261, 1, 0
    %v263 = vcvt.s32.f32 %v262
    %v264 = vsel %vm261, 0.0, %v260
    %265 = vst.msk [vmem:[#allocation5] sm:$0xff] %vm74, %v264
    %267 = vrot.lane.b32.xlu0 %v263, 32
    %v268 = vpop.permute.xlu0 %267
    %v270 = vmul.f32 %v234, %v268
    %v271 = vpack.c.bf16 %v270, %v270
    %v273 = vunpack.c.l.b16 %v271
    %v274 = vpack.c.b16 %v273, %v273
    %275 = vrot.lane.b32.xlu0 %v274, 96
    %v276 = vpop.permute.xlu0 %275
    %278 = vst.msk [vmem:[#allocation2] sm:$0xf] %vm170, %v276
    %280 = vrot.lane.b32.xlu0 %v251, 64
    %v281 = vpop.permute.xlu0 %280
    %283 = vst.msk [vmem:[#allocation3] sm:$0xff] %vm74, %v281
    %s284 = scalar_lea.vmem [#allocation11], 4
    %285 = vst.msk [vmem:[%s284] sm:$0xf] %vm170, %v276
    %v286 = vld [vmem:[#allocation2] sm:$0xf]
    %v287 = vld [vmem:[#allocation3] sm:$0xff]
    %s288 = scalar_lea.vmem [#allocation6], 8
    %v289 = vld [vmem:[%s288] sm:$0xf]
    %v290 = vunpack.c.l.bf16 %v289
    %v292 = vsel %vm74, %v286, 0
    %294 = vmatprep.subr.bf16.mxu0 0
    %295 = vmatpush1.bf16.msra.mxu0 %v70
    %296 = vmatprep.subr.bf16.mxu0 0
    %297 = vmatpush1.bf16.msra.mxu0 %v71
    %298 = vmatprep.subr.bf16.mxu0 0
    %299 = vmatpush1.bf16.msra.mxu0 0
    %300 = vmatprep.subr.bf16.mxu0 0
    %301 = vmatpush1.bf16.msra.mxu0 0
    %302 = vmatprep.subr.bf16.mxu0 0
    %303 = vmatpush1.bf16.msra.mxu0 0
    %304 = vmatprep.subr.bf16.mxu0 0
    %305 = vmatpush1.bf16.msra.mxu0 0
    %306 = vmatprep.subr.bf16.mxu0 0
    %307 = vmatpush1.bf16.msra.mxu0 0
    %308 = vmatprep.subr.bf16.mxu0 0
    %309 = vmatpush1.bf16.msra.mxu0 0
    %310 = vmatprep.subr.bf16.mxu0 0
    %311 = vmatpush1.bf16.msra.mxu0 0
    %312 = vmatprep.subr.bf16.mxu0 0
    %313 = vmatpush1.bf16.msra.mxu0 0
    %314 = vmatprep.subr.bf16.mxu0 0
    %315 = vmatpush1.bf16.msra.mxu0 0
    %316 = vmatprep.subr.bf16.mxu0 0
    %317 = vmatpush1.bf16.msra.mxu0 0
    %318 = vmatprep.subr.bf16.mxu0 0
    %319 = vmatpush1.bf16.msra.mxu0 0
    %320 = vmatprep.subr.bf16.mxu0 0
    %321 = vmatpush1.bf16.msra.mxu0 0
    %322 = vmatprep.subr.bf16.mxu0 0
    %323 = vmatpush1.bf16.msra.mxu0 0
    %324 = vmatprep.subr.bf16.mxu0 0
    %325 = vmatpush1.bf16.msra.mxu0 0
    %326 = vmatprep.mubr.bf16.mxu0 0
    %327 = vmatmul.mubr.bf16.gmra.mrb[0].mxu0 %v292
    %v328 = vpop.f32.mrb[0].mxu0
    %v329 = vadd.f32 0.0, %v328
    %v330 = vpop.f32.mrb[0].mxu0
    %v331 = vpop.f32.mrb[0].mxu0
    %v332 = vpop.f32.mrb[0].mxu0
    %333 = vdwg.mxu0
    %v334 = vadd.f32 %v290, %v329
    %v335 = vld [vmem:[#allocation4] sm:$0xff]
    %v336 = vmul.f32 %v335, 0.5
    %v337 = vmul.f32 %v334, 0.5
    %v338 = vadd.f32 %v336, %v337
    %v339 = vadd.f32 %v338, 0.0
    %vm340 = vcmp.ge.f32.partialorder %v339, 0.1
    %v341 = vsel %vm340, 1, 0
    %v342 = vcvt.s32.f32 %v341
    %v343 = vsel %vm340, 0.0, %v339
    %344 = vst [vmem:[#allocation4] sm:$0xff] %v343
    %346 = vrot.lane.b32.xlu0 %v287, 64
    %v347 = vpop.permute.xlu0 %346
    %v349 = vmul.f32 %v342, %v347
    %351 = vrot.lane.b32.xlu0 %v342, 32
    %v352 = vpop.permute.xlu0 %351
    %v354 = vmul.f32 %v342, %v352
    %356 = vrot.lane.b32.xlu0 %v354, 64
    %v357 = vpop.permute.xlu0 %356
    %v359 = vadd.f32 %v349, %v357
    %v360 = vld [vmem:[#allocation5] sm:$0xff]
    %v361 = vmul.f32 %v360, 0.5
    %v362 = vmul.f32 %v359, 0.5
    %364 = vrot.lane.b32.xlu0 %v362, 64
    %v365 = vpop.permute.xlu0 %364
    %v367 = vadd.f32 %v361, %v365
    %v368 = vadd.f32 %v367, 0.0
    %vm369 = vcmp.ge.f32.partialorder %v368, 0.1
    %v370 = vsel %vm369, 1, 0
    %v371 = vcvt.s32.f32 %v370
    %v372 = vsel %vm369, 0.0, %v368
    %373 = vst.msk [vmem:[#allocation5] sm:$0xff] %vm74, %v372
    %375 = vrot.lane.b32.xlu0 %v371, 32
    %v376 = vpop.permute.xlu0 %375
    %v378 = vmul.f32 %v342, %v376
    %v379 = vpack.c.bf16 %v378, %v378
    %v381 = vunpack.c.l.b16 %v379
    %v382 = vpack.c.b16 %v381, %v381
    %383 = vrot.lane.b32.xlu0 %v382, 96
    %v384 = vpop.permute.xlu0 %383
    %386 = vst.msk [vmem:[#allocation2] sm:$0xf] %vm170, %v384
    %388 = vrot.lane.b32.xlu0 %v359, 64
    %v389 = vpop.permute.xlu0 %388
    %391 = vst.msk [vmem:[#allocation3] sm:$0xff] %vm74, %v389
    %s392 = scalar_lea.vmem [#allocation11], 8
    %393 = vst.msk [vmem:[%s392] sm:$0xf] %vm170, %v384
    %v394 = vld [vmem:[#allocation2] sm:$0xf]
    %v395 = vld [vmem:[#allocation3] sm:$0xff]
    %s396 = scalar_lea.vmem [#allocation6], 12
    %v397 = vld [vmem:[%s396] sm:$0xf]
    %v398 = vunpack.c.l.bf16 %v397
    %v400 = vsel %vm74, %v394, 0
    %402 = vmatprep.subr.bf16.mxu0 0
    %403 = vmatpush1.bf16.msra.mxu0 %v70
    %404 = vmatprep.subr.bf16.mxu0 0
    %405 = vmatpush1.bf16.msra.mxu0 %v71
    %406 = vmatprep.subr.bf16.mxu0 0
    %407 = vmatpush1.bf16.msra.mxu0 0
    %408 = vmatprep.subr.bf16.mxu0 0
    %409 = vmatpush1.bf16.msra.mxu0 0
    %410 = vmatprep.subr.bf16.mxu0 0
    %411 = vmatpush1.bf16.msra.mxu0 0
    %412 = vmatprep.subr.bf16.mxu0 0
    %413 = vmatpush1.bf16.msra.mxu0 0
    %414 = vmatprep.subr.bf16.mxu0 0
    %415 = vmatpush1.bf16.msra.mxu0 0
    %416 = vmatprep.subr.bf16.mxu0 0
    %417 = vmatpush1.bf16.msra.mxu0 0
    %418 = vmatprep.subr.bf16.mxu0 0
    %419 = vmatpush1.bf16.msra.mxu0 0
    %420 = vmatprep.subr.bf16.mxu0 0
    %421 = vmatpush1.bf16.msra.mxu0 0
    %422 = vmatprep.subr.bf16.mxu0 0
    %423 = vmatpush1.bf16.msra.mxu0 0
    %424 = vmatprep.subr.bf16.mxu0 0
    %425 = vmatpush1.bf16.msra.mxu0 0
    %426 = vmatprep.subr.bf16.mxu0 0
    %427 = vmatpush1.bf16.msra.mxu0 0
    %428 = vmatprep.subr.bf16.mxu0 0
    %429 = vmatpush1.bf16.msra.mxu0 0
    %430 = vmatprep.subr.bf16.mxu0 0
    %431 = vmatpush1.bf16.msra.mxu0 0
    %432 = vmatprep.subr.bf16.mxu0 0
    %433 = vmatpush1.bf16.msra.mxu0 0
    %434 = vmatprep.mubr.bf16.mxu0 0
    %435 = vmatmul.mubr.bf16.gmra.mrb[0].mxu0 %v400
    %v436 = vpop.f32.mrb[0].mxu0
    %v437 = vadd.f32 0.0, %v436
    %v438 = vpop.f32.mrb[0].mxu0
    %v439 = vpop.f32.mrb[0].mxu0
    %v440 = vpop.f32.mrb[0].mxu0
    %441 = vdwg.mxu0
    %v442 = vadd.f32 %v398, %v437
    %v443 = vld [vmem:[#allocation4] sm:$0xff]
    %v444 = vmul.f32 %v443, 0.5
    %v445 = vmul.f32 %v442, 0.5
    %v446 = vadd.f32 %v444, %v445
    %v447 = vadd.f32 %v446, 0.0
    %vm448 = vcmp.ge.f32.partialorder %v447, 0.1
    %v449 = vsel %vm448, 1, 0
    %v450 = vcvt.s32.f32 %v449
    %v451 = vsel %vm448, 0.0, %v447
    %452 = vst [vmem:[#allocation4] sm:$0xff] %v451
    %454 = vrot.lane.b32.xlu0 %v395, 64
    %v455 = vpop.permute.xlu0 %454
    %v457 = vmul.f32 %v450, %v455
    %459 = vrot.lane.b32.xlu0 %v450, 32
    %v460 = vpop.permute.xlu0 %459
    %v462 = vmul.f32 %v450, %v460
    %464 = vrot.lane.b32.xlu0 %v462, 64
    %v465 = vpop.permute.xlu0 %464
    %v467 = vadd.f32 %v457, %v465
    %v468 = vld [vmem:[#allocation5] sm:$0xff]
    %v469 = vmul.f32 %v468, 0.5
    %v470 = vmul.f32 %v467, 0.5
    %472 = vrot.lane.b32.xlu0 %v470, 64
    %v473 = vpop.permute.xlu0 %472
    %v475 = vadd.f32 %v469, %v473
    %v476 = vadd.f32 %v475, 0.0
    %vm477 = vcmp.ge.f32.partialorder %v476, 0.1
    %v478 = vsel %vm477, 1, 0
    %v479 = vcvt.s32.f32 %v478
    %v480 = vsel %vm477, 0.0, %v476
    %481 = vst.msk [vmem:[#allocation5] sm:$0xff] %vm74, %v480
    %483 = vrot.lane.b32.xlu0 %v479, 32
    %v484 = vpop.permute.xlu0 %483
    %v486 = vmul.f32 %v450, %v484
    %v487 = vpack.c.bf16 %v486, %v486
    %v489 = vunpack.c.l.b16 %v487
    %v490 = vpack.c.b16 %v489, %v489
    %491 = vrot.lane.b32.xlu0 %v490, 96
    %v492 = vpop.permute.xlu0 %491
    %494 = vst.msk [vmem:[#allocation2] sm:$0xf] %vm170, %v492
    %496 = vrot.lane.b32.xlu0 %v467, 64
    %v497 = vpop.permute.xlu0 %496
    %499 = vst.msk [vmem:[#allocation3] sm:$0xff] %vm74, %v497
    %s500 = scalar_lea.vmem [#allocation11], 12
    %501 = vst.msk [vmem:[%s500] sm:$0xf] %vm170, %v492
    %v502 = vld [vmem:[#allocation2] sm:$0xf]
    %v503 = vld [vmem:[#allocation3] sm:$0xff]
    %s504 = scalar_lea.vmem [#allocation6], 16
    %v505 = vld [vmem:[%s504] sm:$0xf]
    %v506 = vunpack.c.l.bf16 %v505
    %v508 = vsel %vm74, %v502, 0
    %510 = vmatprep.subr.bf16.mxu0 0
    %511 = vmatpush1.bf16.msra.mxu0 %v70
    %512 = vmatprep.subr.bf16.mxu0 0
    %513 = vmatpush1.bf16.msra.mxu0 %v71
    %514 = vmatprep.subr.bf16.mxu0 0
    %515 = vmatpush1.bf16.msra.mxu0 0
    %516 = vmatprep.subr.bf16.mxu0 0
    %517 = vmatpush1.bf16.msra.mxu0 0
    %518 = vmatprep.subr.bf16.mxu0 0
    %519 = vmatpush1.bf16.msra.mxu0 0
    %520 = vmatprep.subr.bf16.mxu0 0
    %521 = vmatpush1.bf16.msra.mxu0 0
    %522 = vmatprep.subr.bf16.mxu0 0
    %523 = vmatpush1.bf16.msra.mxu0 0
    %524 = vmatprep.subr.bf16.mxu0 0
    %525 = vmatpush1.bf16.msra.mxu0 0
    %526 = vmatprep.subr.bf16.mxu0 0
    %527 = vmatpush1.bf16.msra.mxu0 0
    %528 = vmatprep.subr.bf16.mxu0 0
    %529 = vmatpush1.bf16.msra.mxu0 0
    %530 = vmatprep.subr.bf16.mxu0 0
    %531 = vmatpush1.bf16.msra.mxu0 0
    %532 = vmatprep.subr.bf16.mxu0 0
    %533 = vmatpush1.bf16.msra.mxu0 0
    %534 = vmatprep.subr.bf16.mxu0 0
    %535 = vmatpush1.bf16.msra.mxu0 0
    %536 = vmatprep.subr.bf16.mxu0 0
    %537 = vmatpush1.bf16.msra.mxu0 0
    %538 = vmatprep.subr.bf16.mxu0 0
    %539 = vmatpush1.bf16.msra.mxu0 0
    %540 = vmatprep.subr.bf16.mxu0 0
    %541 = vmatpush1.bf16.msra.mxu0 0
    %542 = vmatprep.mubr.bf16.mxu0 0
    %543 = vmatmul.mubr.bf16.gmra.mrb[0].mxu0 %v508
    %v544 = vpop.f32.mrb[0].mxu0
    %v545 = vadd.f32 0.0, %v544
    %v546 = vpop.f32.mrb[0].mxu0
    %v547 = vpop.f32.mrb[0].mxu0
    %v548 = vpop.f32.mrb[0].mxu0
    %549 = vdwg.mxu0
    %v550 = vadd.f32 %v506, %v545
    %v551 = vld [vmem:[#allocation4] sm:$0xff]
    %v552 = vmul.f32 %v551, 0.5
    %v553 = vmul.f32 %v550, 0.5
    %v554 = vadd.f32 %v552, %v553
    %v555 = vadd.f32 %v554, 0.0
    %vm556 = vcmp.ge.f32.partialorder %v555, 0.1
    %v557 = vsel %vm556, 1, 0
    %v558 = vcvt.s32.f32 %v557
    %v559 = vsel %vm556, 0.0, %v555
    %560 = vst [vmem:[#allocation4] sm:$0xff] %v559
    %562 = vrot.lane.b32.xlu0 %v503, 64
    %v563 = vpop.permute.xlu0 %562
    %v565 = vmul.f32 %v558, %v563
    %567 = vrot.lane.b32.xlu0 %v558, 32
    %v568 = vpop.permute.xlu0 %567
    %v570 = vmul.f32 %v558, %v568
    %572 = vrot.lane.b32.xlu0 %v570, 64
    %v573 = vpop.permute.xlu0 %572
    %v575 = vadd.f32 %v565, %v573
    %v576 = vld [vmem:[#allocation5] sm:$0xff]
    %v577 = vmul.f32 %v576, 0.5
    %v578 = vmul.f32 %v575, 0.5
    %580 = vrot.lane.b32.xlu0 %v578, 64
    %v581 = vpop.permute.xlu0 %580
    %v583 = vadd.f32 %v577, %v581
    %v584 = vadd.f32 %v583, 0.0
    %vm585 = vcmp.ge.f32.partialorder %v584, 0.1
    %v586 = vsel %vm585, 1, 0
    %v587 = vcvt.s32.f32 %v586
    %v588 = vsel %vm585, 0.0, %v584
    %589 = vst.msk [vmem:[#allocation5] sm:$0xff] %vm74, %v588
    %591 = vrot.lane.b32.xlu0 %v587, 32
    %v592 = vpop.permute.xlu0 %591
    %v594 = vmul.f32 %v558, %v592
    %v595 = vpack.c.bf16 %v594, %v594
    %v597 = vunpack.c.l.b16 %v595
    %v598 = vpack.c.b16 %v597, %v597
    %599 = vrot.lane.b32.xlu0 %v598, 96
    %v600 = vpop.permute.xlu0 %599
    %602 = vst.msk [vmem:[#allocation2] sm:$0xf] %vm170, %v600
    %604 = vrot.lane.b32.xlu0 %v575, 64
    %v605 = vpop.permute.xlu0 %604
    %607 = vst.msk [vmem:[#allocation3] sm:$0xff] %vm74, %v605
    %s608 = scalar_lea.vmem [#allocation11], 16
    %609 = vst.msk [vmem:[%s608] sm:$0xf] %vm170, %v600
    %v610 = vld [vmem:[#allocation2] sm:$0xf]
    %v611 = vld [vmem:[#allocation3] sm:$0xff]
    %s612 = scalar_lea.vmem [#allocation6], 20
    %v613 = vld [vmem:[%s612] sm:$0xf]
    %v614 = vunpack.c.l.bf16 %v613
    %v616 = vsel %vm74, %v610, 0
    %618 = vmatprep.subr.bf16.mxu0 0
    %619 = vmatpush1.bf16.msra.mxu0 %v70
    %620 = vmatprep.subr.bf16.mxu0 0
    %621 = vmatpush1.bf16.msra.mxu0 %v71
    %622 = vmatprep.subr.bf16.mxu0 0
    %623 = vmatpush1.bf16.msra.mxu0 0
    %624 = vmatprep.subr.bf16.mxu0 0
    %625 = vmatpush1.bf16.msra.mxu0 0
    %626 = vmatprep.subr.bf16.mxu0 0
    %627 = vmatpush1.bf16.msra.mxu0 0
    %628 = vmatprep.subr.bf16.mxu0 0
    %629 = vmatpush1.bf16.msra.mxu0 0
    %630 = vmatprep.subr.bf16.mxu0 0
    %631 = vmatpush1.bf16.msra.mxu0 0
    %632 = vmatprep.subr.bf16.mxu0 0
    %633 = vmatpush1.bf16.msra.mxu0 0
    %634 = vmatprep.subr.bf16.mxu0 0
    %635 = vmatpush1.bf16.msra.mxu0 0
    %636 = vmatprep.subr.bf16.mxu0 0
    %637 = vmatpush1.bf16.msra.mxu0 0
    %638 = vmatprep.subr.bf16.mxu0 0
    %639 = vmatpush1.bf16.msra.mxu0 0
    %640 = vmatprep.subr.bf16.mxu0 0
    %641 = vmatpush1.bf16.msra.mxu0 0
    %642 = vmatprep.subr.bf16.mxu0 0
    %643 = vmatpush1.bf16.msra.mxu0 0
    %644 = vmatprep.subr.bf16.mxu0 0
    %645 = vmatpush1.bf16.msra.mxu0 0
    %646 = vmatprep.subr.bf16.mxu0 0
    %647 = vmatpush1.bf16.msra.mxu0 0
    %648 = vmatprep.subr.bf16.mxu0 0
    %649 = vmatpush1.bf16.msra.mxu0 0
    %650 = vmatprep.mubr.bf16.mxu0 0
    %651 = vmatmul.mubr.bf16.gmra.mrb[0].mxu0 %v616
    %v652 = vpop.f32.mrb[0].mxu0
    %v653 = vadd.f32 0.0, %v652
    %v654 = vpop.f32.mrb[0].mxu0
    %v655 = vpop.f32.mrb[0].mxu0
    %v656 = vpop.f32.mrb[0].mxu0
    %657 = vdwg.mxu0
    %v658 = vadd.f32 %v614, %v653
    %v659 = vld [vmem:[#allocation4] sm:$0xff]
    %v660 = vmul.f32 %v659, 0.5
    %v661 = vmul.f32 %v658, 0.5
    %v662 = vadd.f32 %v660, %v661
    %v663 = vadd.f32 %v662, 0.0
    %vm664 = vcmp.ge.f32.partialorder %v663, 0.1
    %v665 = vsel %vm664, 1, 0
    %v666 = vcvt.s32.f32 %v665
    %v667 = vsel %vm664, 0.0, %v663
    %668 = vst [vmem:[#allocation4] sm:$0xff] %v667
    %670 = vrot.lane.b32.xlu0 %v611, 64
    %v671 = vpop.permute.xlu0 %670
    %v673 = vmul.f32 %v666, %v671
    %675 = vrot.lane.b32.xlu0 %v666, 32
    %v676 = vpop.permute.xlu0 %675
    %v678 = vmul.f32 %v666, %v676
    %680 = vrot.lane.b32.xlu0 %v678, 64
    %v681 = vpop.permute.xlu0 %680
    %v683 = vadd.f32 %v673, %v681
    %v684 = vld [vmem:[#allocation5] sm:$0xff]
    %v685 = vmul.f32 %v684, 0.5
    %v686 = vmul.f32 %v683, 0.5
    %688 = vrot.lane.b32.xlu0 %v686, 64
    %v689 = vpop.permute.xlu0 %688
    %v691 = vadd.f32 %v685, %v689
    %v692 = vadd.f32 %v691, 0.0
    %vm693 = vcmp.ge.f32.partialorder %v692, 0.1
    %v694 = vsel %vm693, 1, 0
    %v695 = vcvt.s32.f32 %v694
    %v696 = vsel %vm693, 0.0, %v692
    %697 = vst.msk [vmem:[#allocation5] sm:$0xff] %vm74, %v696
    %699 = vrot.lane.b32.xlu0 %v695, 32
    %v700 = vpop.permute.xlu0 %699
    %v702 = vmul.f32 %v666, %v700
    %v703 = vpack.c.bf16 %v702, %v702
    %v705 = vunpack.c.l.b16 %v703
    %v706 = vpack.c.b16 %v705, %v705
    %707 = vrot.lane.b32.xlu0 %v706, 96
    %v708 = vpop.permute.xlu0 %707
    %710 = vst.msk [vmem:[#allocation2] sm:$0xf] %vm170, %v708
    %712 = vrot.lane.b32.xlu0 %v683, 64
    %v713 = vpop.permute.xlu0 %712
    %715 = vst.msk [vmem:[#allocation3] sm:$0xff] %vm74, %v713
    %s716 = scalar_lea.vmem [#allocation11], 20
    %717 = vst.msk [vmem:[%s716] sm:$0xf] %vm170, %v708
    %v718 = vld [vmem:[#allocation2] sm:$0xf]
    %v719 = vld [vmem:[#allocation3] sm:$0xff]
    %s720 = scalar_lea.vmem [#allocation6], 24
    %v721 = vld [vmem:[%s720] sm:$0xf]
    %v722 = vunpack.c.l.bf16 %v721
    %v724 = vsel %vm74, %v718, 0
    %726 = vmatprep.subr.bf16.mxu0 0
    %727 = vmatpush1.bf16.msra.mxu0 %v70
    %728 = vmatprep.subr.bf16.mxu0 0
    %729 = vmatpush1.bf16.msra.mxu0 %v71
    %730 = vmatprep.subr.bf16.mxu0 0
    %731 = vmatpush1.bf16.msra.mxu0 0
    %732 = vmatprep.subr.bf16.mxu0 0
    %733 = vmatpush1.bf16.msra.mxu0 0
    %734 = vmatprep.subr.bf16.mxu0 0
    %735 = vmatpush1.bf16.msra.mxu0 0
    %736 = vmatprep.subr.bf16.mxu0 0
    %737 = vmatpush1.bf16.msra.mxu0 0
    %738 = vmatprep.subr.bf16.mxu0 0
    %739 = vmatpush1.bf16.msra.mxu0 0
    %740 = vmatprep.subr.bf16.mxu0 0
    %741 = vmatpush1.bf16.msra.mxu0 0
    %742 = vmatprep.subr.bf16.mxu0 0
    %743 = vmatpush1.bf16.msra.mxu0 0
    %744 = vmatprep.subr.bf16.mxu0 0
    %745 = vmatpush1.bf16.msra.mxu0 0
    %746 = vmatprep.subr.bf16.mxu0 0
    %747 = vmatpush1.bf16.msra.mxu0 0
    %748 = vmatprep.subr.bf16.mxu0 0
    %749 = vmatpush1.bf16.msra.mxu0 0
    %750 = vmatprep.subr.bf16.mxu0 0
    %751 = vmatpush1.bf16.msra.mxu0 0
    %752 = vmatprep.subr.bf16.mxu0 0
    %753 = vmatpush1.bf16.msra.mxu0 0
    %754 = vmatprep.subr.bf16.mxu0 0
    %755 = vmatpush1.bf16.msra.mxu0 0
    %756 = vmatprep.subr.bf16.mxu0 0
    %757 = vmatpush1.bf16.msra.mxu0 0
    %758 = vmatprep.mubr.bf16.mxu0 0
    %759 = vmatmul.mubr.bf16.gmra.mrb[0].mxu0 %v724
    %v760 = vpop.f32.mrb[0].mxu0
    %v761 = vadd.f32 0.0, %v760
    %v762 = vpop.f32.mrb[0].mxu0
    %v763 = vpop.f32.mrb[0].mxu0
    %v764 = vpop.f32.mrb[0].mxu0
    %765 = vdwg.mxu0
    %v766 = vadd.f32 %v722, %v761
    %v767 = vld [vmem:[#allocation4] sm:$0xff]
    %v768 = vmul.f32 %v767, 0.5
    %v769 = vmul.f32 %v766, 0.5
    %v770 = vadd.f32 %v768, %v769
    %v771 = vadd.f32 %v770, 0.0
    %vm772 = vcmp.ge.f32.partialorder %v771, 0.1
    %v773 = vsel %vm772, 1, 0
    %v774 = vcvt.s32.f32 %v773
    %v775 = vsel %vm772, 0.0, %v771
    %776 = vst [vmem:[#allocation4] sm:$0xff] %v775
    %778 = vrot.lane.b32.xlu0 %v719, 64
    %v779 = vpop.permute.xlu0 %778
    %v781 = vmul.f32 %v774, %v779
    %783 = vrot.lane.b32.xlu0 %v774, 32
    %v784 = vpop.permute.xlu0 %783
    %v786 = vmul.f32 %v774, %v784
    %788 = vrot.lane.b32.xlu0 %v786, 64
    %v789 = vpop.permute.xlu0 %788
    %v791 = vadd.f32 %v781, %v789
    %v792 = vld [vmem:[#allocation5] sm:$0xff]
    %v793 = vmul.f32 %v792, 0.5
    %v794 = vmul.f32 %v791, 0.5
    %796 = vrot.lane.b32.xlu0 %v794, 64
    %v797 = vpop.permute.xlu0 %796
    %v799 = vadd.f32 %v793, %v797
    %v800 = vadd.f32 %v799, 0.0
    %vm801 = vcmp.ge.f32.partialorder %v800, 0.1
    %v802 = vsel %vm801, 1, 0
    %v803 = vcvt.s32.f32 %v802
    %v804 = vsel %vm801, 0.0, %v800
    %805 = vst.msk [vmem:[#allocation5] sm:$0xff] %vm74, %v804
    %807 = vrot.lane.b32.xlu0 %v803, 32
    %v808 = vpop.permute.xlu0 %807
    %v810 = vmul.f32 %v774, %v808
    %v811 = vpack.c.bf16 %v810, %v810
    %v813 = vunpack.c.l.b16 %v811
    %v814 = vpack.c.b16 %v813, %v813
    %815 = vrot.lane.b32.xlu0 %v814, 96
    %v816 = vpop.permute.xlu0 %815
    %818 = vst.msk [vmem:[#allocation2] sm:$0xf] %vm170, %v816
    %820 = vrot.lane.b32.xlu0 %v791, 64
    %v821 = vpop.permute.xlu0 %820
    %823 = vst.msk [vmem:[#allocation3] sm:$0xff] %vm74, %v821
    %s824 = scalar_lea.vmem [#allocation11], 24
    %825 = vst.msk [vmem:[%s824] sm:$0xf] %vm170, %v816
    %v826 = vld [vmem:[#allocation2] sm:$0xf]
    %v827 = vld [vmem:[#allocation3] sm:$0xff]
    %s828 = scalar_lea.vmem [#allocation6], 28
    %v829 = vld [vmem:[%s828] sm:$0xf]
    %v830 = vunpack.c.l.bf16 %v829
    %v832 = vsel %vm74, %v826, 0
    %834 = vmatprep.subr.bf16.mxu0 0
    %835 = vmatpush1.bf16.msra.mxu0 %v70
    %836 = vmatprep.subr.bf16.mxu0 0
    %837 = vmatpush1.bf16.msra.mxu0 %v71
    %838 = vmatprep.subr.bf16.mxu0 0
    %839 = vmatpush1.bf16.msra.mxu0 0
    %840 = vmatprep.subr.bf16.mxu0 0
    %841 = vmatpush1.bf16.msra.mxu0 0
    %842 = vmatprep.subr.bf16.mxu0 0
    %843 = vmatpush1.bf16.msra.mxu0 0
    %844 = vmatprep.subr.bf16.mxu0 0
    %845 = vmatpush1.bf16.msra.mxu0 0
    %846 = vmatprep.subr.bf16.mxu0 0
    %847 = vmatpush1.bf16.msra.mxu0 0
    %848 = vmatprep.subr.bf16.mxu0 0
    %849 = vmatpush1.bf16.msra.mxu0 0
    %850 = vmatprep.subr.bf16.mxu0 0
    %851 = vmatpush1.bf16.msra.mxu0 0
    %852 = vmatprep.subr.bf16.mxu0 0
    %853 = vmatpush1.bf16.msra.mxu0 0
    %854 = vmatprep.subr.bf16.mxu0 0
    %855 = vmatpush1.bf16.msra.mxu0 0
    %856 = vmatprep.subr.bf16.mxu0 0
    %857 = vmatpush1.bf16.msra.mxu0 0
    %858 = vmatprep.subr.bf16.mxu0 0
    %859 = vmatpush1.bf16.msra.mxu0 0
    %860 = vmatprep.subr.bf16.mxu0 0
    %861 = vmatpush1.bf16.msra.mxu0 0
    %862 = vmatprep.subr.bf16.mxu0 0
    %863 = vmatpush1.bf16.msra.mxu0 0
    %864 = vmatprep.subr.bf16.mxu0 0
    %865 = vmatpush1.bf16.msra.mxu0 0
    %866 = vmatprep.mubr.bf16.mxu0 0
    %867 = vmatmul.mubr.bf16.gmra.mrb[0].mxu0 %v832
    %v868 = vpop.f32.mrb[0].mxu0
    %v869 = vadd.f32 0.0, %v868
    %v870 = vpop.f32.mrb[0].mxu0
    %v871 = vpop.f32.mrb[0].mxu0
    %v872 = vpop.f32.mrb[0].mxu0
    %873 = vdwg.mxu0
    %v874 = vadd.f32 %v830, %v869
    %v875 = vld [vmem:[#allocation4] sm:$0xff]
    %v876 = vmul.f32 %v875, 0.5
    %v877 = vmul.f32 %v874, 0.5
    %v878 = vadd.f32 %v876, %v877
    %v879 = vadd.f32 %v878, 0.0
    %vm880 = vcmp.ge.f32.partialorder %v879, 0.1
    %v881 = vsel %vm880, 1, 0
    %v882 = vcvt.s32.f32 %v881
    %v883 = vsel %vm880, 0.0, %v879
    %884 = vst [vmem:[#allocation4] sm:$0xff] %v883
    %886 = vrot.lane.b32.xlu0 %v827, 64
    %v887 = vpop.permute.xlu0 %886
    %v889 = vmul.f32 %v882, %v887
    %891 = vrot.lane.b32.xlu0 %v882, 32
    %v892 = vpop.permute.xlu0 %891
    %v894 = vmul.f32 %v882, %v892
    %896 = vrot.lane.b32.xlu0 %v894, 64
    %v897 = vpop.permute.xlu0 %896
    %v899 = vadd.f32 %v889, %v897
    %v900 = vld [vmem:[#allocation5] sm:$0xff]
    %v901 = vmul.f32 %v900, 0.5
    %v902 = vmul.f32 %v899, 0.5
    %904 = vrot.lane.b32.xlu0 %v902, 64
    %v905 = vpop.permute.xlu0 %904
    %v907 = vadd.f32 %v901, %v905
    %v908 = vadd.f32 %v907, 0.0
    %vm909 = vcmp.ge.f32.partialorder %v908, 0.1
    %v910 = vsel %vm909, 1, 0
    %v911 = vcvt.s32.f32 %v910
    %v912 = vsel %vm909, 0.0, %v908
    %913 = vst.msk [vmem:[#allocation5] sm:$0xff] %vm74, %v912
    %915 = vrot.lane.b32.xlu0 %v911, 32
    %v916 = vpop.permute.xlu0 %915
    %v918 = vmul.f32 %v882, %v916
    %v919 = vpack.c.bf16 %v918, %v918
    %v921 = vunpack.c.l.b16 %v919
    %v922 = vpack.c.b16 %v921, %v921
    %923 = vrot.lane.b32.xlu0 %v922, 96
    %v924 = vpop.permute.xlu0 %923
    %926 = vst.msk [vmem:[#allocation2] sm:$0xf] %vm170, %v924
    %928 = vrot.lane.b32.xlu0 %v899, 64
    %v929 = vpop.permute.xlu0 %928
    %931 = vst.msk [vmem:[#allocation3] sm:$0xff] %vm74, %v929
    %s932 = scalar_lea.vmem [#allocation11], 28
    %933 = vst.msk [vmem:[%s932] sm:$0xf] %vm170, %v924
    // Predicated region
    $region22: #{tpu_custom_call.1} parent=1 // pred_check
      %p934 = pneg %p44
    $region23: #{tpu_custom_call.1} parent=1 // pred_check_branch
      %936 = sbr.rel (%p934) target = $region25
    $region24: #{tpu_custom_call.1} parent=1 // pred_region
      %v937 = vld [vmem:[#allocation3] sm:$0xff]
      %938 = vst.msk [vmem:[#allocation12] sm:$0xff] %vm74, %v937
    $region25: #{tpu_custom_call.1} parent=1 // pred_fallthru
      _
    // Predicated region
    $region26: #{tpu_custom_call.1} parent=1 // pred_check
      _
    $region27: #{tpu_custom_call.1} parent=1 // pred_check_branch
      %940 = sbr.rel (0) target = $region29
    $region28: #{tpu_custom_call.1} parent=1 // pred_region
      %s942 = ssub.s32 512, 512
      %943 = vsyncadd [#allocation8], %s942
      %s944 = sshll.u32 [#allocation11], 4
      %s945 = int_to_ptr.vmem [resolvable:$true] %s944
      %950 = dma.vmem_to_hbm [thread:$0]  %s945, 512, %s2, [#allocation8], 64, 64, 4
    $region29: #{tpu_custom_call.1} parent=1 // pred_fallthru
      _
    // Predicated region
    $region30: #{tpu_custom_call.1} parent=1 // pred_check
      _
    $region31: #{tpu_custom_call.1} parent=1 // pred_check_branch
      %952 = sbr.rel (0) target = $region33
    $region32: #{tpu_custom_call.1} parent=1 // pred_region
      %s954 = ssub.s32 128, 128
      %955 = vsyncadd [#allocation13], %s954
      %s957 = sshll.u32 [#allocation12], 4
      %s958 = int_to_ptr.vmem [resolvable:$true] %s957
      %960 = dma.vmem_to_hbm [thread:$0]  %s958, 128, %s3, [#allocation13]
    $region33: #{tpu_custom_call.1} parent=1 // pred_fallthru
      _
    // Predicated region
    $region34: #{tpu_custom_call.1} parent=1 // pred_check
      _
    $region35: #{tpu_custom_call.1} parent=1 // pred_check_branch
      %962 = sbr.rel (0) target = $region37
    $region36: #{tpu_custom_call.1} parent=1 // pred_region
      %963 = dma.done [#allocation8], 512
    $region37: #{tpu_custom_call.1} parent=1 // pred_fallthru
      _
    // Predicated region
    $region38: #{tpu_custom_call.1} parent=1 // pred_check
      _
    $region39: #{tpu_custom_call.1} parent=1 // pred_check_branch
      %965 = sbr.rel (0) target = $region41
    $region40: #{tpu_custom_call.1} parent=1 // pred_region
      %966 = dma.done [#allocation13], 128
    $region41: #{tpu_custom_call.1} parent=1 // pred_fallthru
      _
    %967 = vsyncpa [#allocation7], 1
    %968 = vsyncpa [#allocation10], 1
    %969 = vsyncpa [#allocation8], 1
    %970 = vsyncpa [#allocation13], 1

</llo_original>
